<compile_context>
chip_gen: v5e
topology: v5e:2x2
jax: 0.10.0
libtpu: 0.0.40
codegen_flags: <defaults>
</compile_context>

<pallas_src>
import functools

import jax
import jax.numpy as jnp
from jax.experimental import pallas as pl
from jax.experimental.pallas import tpu as pltpu


# ----------------------------------------------------------------------------
# Fused multi-layer LSTM kernel (single invocation, no grid).
# ----------------------------------------------------------------------------
def _make_core_lstm_kernel(n_layers, seq_len, batch, hidden):
    T, B, H = seq_len, batch, hidden

    def kernel(*refs):
        # --- inputs -----------------------------------------------------
        x_ref = refs[0]                        # (T*B, E)  time-major, flat
        h0_ref = refs[1]                       # (L, B, H)
        c0_ref = refs[2]                       # (L, B, H)
        w_refs = refs[3:3 + 3 * n_layers]      # per layer: W_ih^T, W_hh^T, bias
        # --- outputs ----------------------------------------------------
        y_ref, hn_ref, cn_ref = refs[3 + 3 * n_layers:6 + 3 * n_layers]
        # --- scratch ----------------------------------------------------
        gx_s, h_s, c_s = refs[6 + 3 * n_layers:]

        for layer in range(n_layers):          # static python loop (L small)
            wih = w_refs[3 * layer][...]        # (E_l, 4H)
            whh = w_refs[3 * layer + 1][...]    # (H, 4H)
            bias = w_refs[3 * layer + 2][...]   # (1, 4H)

            # Hoisted input projection: one matmul covering every timestep of
            # this layer's input.  Layer 0 reads x; deeper layers read the
            # previous layer's output, which is resident in y_ref (VMEM).
            xin = x_ref[...] if layer == 0 else y_ref[...]   # (T*B, E_l)
            gx_s[...] = (
                jnp.dot(xin, wih, preferred_element_type=jnp.float32) + bias)

            h_s[...] = h0_ref[layer]
            c_s[...] = c0_ref[layer]

            def step(t, carry):
                row = t * B
                h_prev = h_s[...]               # (B, H)
                c_prev = c_s[...]               # (B, H)
                gates = gx_s[pl.ds(row, B), :] + jnp.dot(
                    h_prev, whh, preferred_element_type=jnp.float32)
                # PyTorch gate ordering [i, f, g, o].
                i_g = jax.nn.sigmoid(gates[:, 0 * H:1 * H])
                f_g = jax.nn.sigmoid(gates[:, 1 * H:2 * H])
                g_g = jnp.tanh(gates[:, 2 * H:3 * H])
                o_g = jax.nn.sigmoid(gates[:, 3 * H:4 * H])
                c_new = f_g * c_prev + i_g * g_g
                h_new = o_g * jnp.tanh(c_new)
                h_s[...] = h_new
                c_s[...] = c_new
                y_ref[pl.ds(row, B), :] = h_new
                return carry

            jax.lax.fori_loop(0, T, step, 0, unroll=True)

            # Final-state writeback: exactly once per layer.
            hn_ref[layer] = h_s[...]
            cn_ref[layer] = c_s[...]

    return kernel


def lstm_core_pallas(x_flat, h0, c0, layer_weights, *, seq_len, batch, hidden):
    """x_flat: (T*B, E) time-major; layer_weights: [W_ih^T, W_hh^T, bias] * L."""
    n_layers = len(layer_weights) // 3
    kernel = _make_core_lstm_kernel(n_layers, seq_len, batch, hidden)
    vmem = pl.BlockSpec(memory_space=pltpu.MemorySpace.VMEM)
    n_in = 3 + len(layer_weights)

    y_flat, h_n, c_n = pl.pallas_call(
        kernel,
        out_shape=(
            jax.ShapeDtypeStruct((seq_len * batch, hidden), jnp.float32),
            jax.ShapeDtypeStruct((n_layers, batch, hidden), jnp.float32),
            jax.ShapeDtypeStruct((n_layers, batch, hidden), jnp.float32),
        ),
        in_specs=[vmem] * n_in,
        out_specs=(vmem, vmem, vmem),
        scratch_shapes=[
            pltpu.VMEM((seq_len * batch, 4 * hidden), jnp.float32),  # gates_x
            pltpu.VMEM((batch, hidden), jnp.float32),                # h state
            pltpu.VMEM((batch, hidden), jnp.float32),                # c state
        ],
    )(x_flat, h0, c0, *layer_weights)
    return y_flat, h_n, c_n


# ----------------------------------------------------------------------------
# Core module: parameter init (pre-transposed weights) + forward glue.
# ----------------------------------------------------------------------------
def init_core_params(key, embedding_dim, hidden_dim, n_layers):
    params = []
    bound = 1.0 / (hidden_dim ** 0.5)
    for layer in range(n_layers):
        in_dim = embedding_dim if layer == 0 else hidden_dim
        key, k1, k2, k3, k4 = jax.random.split(key, 5)
        w_ih = jax.random.uniform(k1, (4 * hidden_dim, in_dim),
                                  jnp.float32, -bound, bound)
        w_hh = jax.random.uniform(k2, (4 * hidden_dim, hidden_dim),
                                  jnp.float32, -bound, bound)
        b_ih = jax.random.uniform(k3, (4 * hidden_dim,),
                                  jnp.float32, -bound, bound)
        b_hh = jax.random.uniform(k4, (4 * hidden_dim,),
                                  jnp.float32, -bound, bound)
        params.append({
            "w_ih_t": jnp.transpose(w_ih),                       # (in_dim, 4H)
            "w_hh_t": jnp.transpose(w_hh),                       # (H, 4H)
            "bias": (b_ih + b_hh).reshape(1, 4 * hidden_dim),    # (1, 4H)
        })
    return params


def core_forward(params, embedded_scalar, embedded_entity,
                 sequence_length, hidden_dim, n_layers, hidden_state=None):
    """Mirrors Core.forward.  Returns (lstm_output (B*T, H), (h_n, c_n))."""
    batch_size = embedded_entity.shape[0]
    x = jnp.concatenate([embedded_entity, embedded_scalar], axis=-1)
    embedding_size = x.shape[-1] // sequence_length
    x = x.reshape(batch_size, sequence_length, embedding_size)

    if hidden_state is None:
        h0 = jnp.zeros((n_layers, batch_size, hidden_dim), jnp.float32)
        c0 = jnp.zeros((n_layers, batch_size, hidden_dim), jnp.float32)
    else:
        h0, c0 = hidden_state
        h0 = h0.astype(jnp.float32)
        c0 = c0.astype(jnp.float32)

    # Time-major, flattened (T*B, E) for the kernel.
    x_flat = jnp.transpose(x, (1, 0, 2)).reshape(
        sequence_length * batch_size, embedding_size).astype(jnp.float32)

    layer_weights = []
    for p in params:
        layer_weights += [p["w_ih_t"], p["w_hh_t"], p["bias"]]

    y_flat, h_n, c_n = lstm_core_pallas(
        x_flat, h0, c0, layer_weights,
        seq_len=sequence_length, batch=batch_size, hidden=hidden_dim)

    lstm_output = (y_flat.reshape(sequence_length, batch_size, hidden_dim)
                   .transpose(1, 0, 2)
                   .reshape(batch_size * sequence_length, hidden_dim))
    return lstm_output, (h_n, c_n)


# ----------------------------------------------------------------------------
# Pure-JAX reference (correctness check, both hidden_state paths).
# ----------------------------------------------------------------------------
def core_forward_ref(params, embedded_scalar, embedded_entity,
                     sequence_length, hidden_dim, n_layers, hidden_state=None):
    batch_size = embedded_entity.shape[0]
    x = jnp.concatenate([embedded_entity, embedded_scalar], axis=-1)
    E = x.shape[-1] // sequence_length
    x_t = jnp.transpose(x.reshape(batch_size, sequence_length, E), (1, 0, 2))

    if hidden_state is None:
        h0 = jnp.zeros((n_layers, batch_size, hidden_dim), jnp.float32)
        c0 = jnp.zeros_like(h0)
    else:
        h0, c0 = hidden_state

    H = hidden_dim
    h_finals, c_finals = [], []
    for layer in range(n_layers):
        p = params[layer]

        def step(carry, x_step, p=p):
            h, c = carry
            gates = x_step @ p["w_ih_t"] + h @ p["w_hh_t"] + p["bias"]
            i = jax.nn.sigmoid(gates[:, 0:H])
            f = jax.nn.sigmoid(gates[:, H:2 * H])
            g = jnp.tanh(gates[:, 2 * H:3 * H])
            o = jax.nn.sigmoid(gates[:, 3 * H:4 * H])
            c = f * c + i * g
            h = o * jnp.tanh(c)
            return (h, c), h

        (hf, cf), x_t = jax.lax.scan(step, (h0[layer], c0[layer]), x_t)
        h_finals.append(hf)
        c_finals.append(cf)

    out = jnp.transpose(x_t, (1, 0, 2)).reshape(
        batch_size * sequence_length, hidden_dim)
    return out, (jnp.stack(h_finals), jnp.stack(c_finals))


# ----------------------------------------------------------------------------
if __name__ == "__main__":
    BATCH = 2
    SEQ = 8
    HIDDEN = 32          # hidden_dim
    EMB = 32             # embedding_dim (lstm_input)
    N_LAYERS = 2
    D_ENTITY = 128       # D_ENTITY + D_SCALAR == SEQ * EMB
    D_SCALAR = 128

    key = jax.random.PRNGKey(0)
    kp, ke, ks, kh, kc = jax.random.split(key, 5)

    params = init_core_params(kp, EMB, HIDDEN, N_LAYERS)
    embedded_entity = jax.random.normal(ke, (BATCH, D_ENTITY), jnp.float32)
    embedded_scalar = jax.random.normal(ks, (BATCH, D_SCALAR), jnp.float32)

    fwd = jax.jit(functools.partial(core_forward, sequence_length=SEQ,
                                    hidden_dim=HIDDEN, n_layers=N_LAYERS))
    ref = functools.partial(core_forward_ref, sequence_length=SEQ,
                            hidden_dim=HIDDEN, n_layers=N_LAYERS)

    # --- path 1: zero initial state (hidden_state=None) ---
    out, (h_n, c_n) = fwd(params, embedded_scalar, embedded_entity)
    jax.block_until_ready(out)
    jax.block_until_ready(h_n)
    jax.block_until_ready(c_n)

    assert out.shape == (BATCH * SEQ, HIDDEN)
    assert h_n.shape == (N_LAYERS, BATCH, HIDDEN)
    assert c_n.shape == (N_LAYERS, BATCH, HIDDEN)

    r_out, (r_h, r_c) = ref(params, embedded_scalar, embedded_entity)
    assert jnp.allclose(out, r_out, atol=1e-4, rtol=1e-4)
    assert jnp.allclose(h_n, r_h, atol=1e-4, rtol=1e-4)
    assert jnp.allclose(c_n, r_c, atol=1e-4, rtol=1e-4)

    # --- path 2: user-provided (h0, c0) ---
    h0 = 0.1 * jax.random.normal(kh, (N_LAYERS, BATCH, HIDDEN), jnp.float32)
    c0 = 0.1 * jax.random.normal(kc, (N_LAYERS, BATCH, HIDDEN), jnp.float32)
    out2, (h_n2, c_n2) = fwd(params, embedded_scalar, embedded_entity,
                             hidden_state=(h0, c0))
    jax.block_until_ready(out2)
    r_out2, (r_h2, r_c2) = ref(params, embedded_scalar, embedded_entity,
                               hidden_state=(h0, c0))
    assert jnp.allclose(out2, r_out2, atol=1e-4, rtol=1e-4)
    assert jnp.allclose(h_n2, r_h2, atol=1e-4, rtol=1e-4)
    assert jnp.allclose(c_n2, r_c2, atol=1e-4, rtol=1e-4)

    print("KERNEL_OK")
</pallas_src>

<mosaic_0001>
module attributes {stable_mosaic.version = 11 : i64} {
  func.func @kernel(%arg0: memref<16x32xf32, #tpu.memory_space<vmem>>, %arg1: memref<2x2x32xf32, #tpu.memory_space<vmem>>, %arg2: memref<2x2x32xf32, #tpu.memory_space<vmem>>, %arg3: memref<32x128xf32, #tpu.memory_space<vmem>>, %arg4: memref<32x128xf32, #tpu.memory_space<vmem>>, %arg5: memref<1x128xf32, #tpu.memory_space<vmem>>, %arg6: memref<32x128xf32, #tpu.memory_space<vmem>>, %arg7: memref<32x128xf32, #tpu.memory_space<vmem>>, %arg8: memref<1x128xf32, #tpu.memory_space<vmem>>, %arg9: memref<16x32xf32, #tpu.memory_space<vmem>>, %arg10: memref<2x2x32xf32, #tpu.memory_space<vmem>>, %arg11: memref<2x2x32xf32, #tpu.memory_space<vmem>>, %arg12: memref<16x128xf32, #tpu.memory_space<vmem>>, %arg13: memref<2x32xf32, #tpu.memory_space<vmem>>, %arg14: memref<2x32xf32, #tpu.memory_space<vmem>>) attributes {dimension_semantics = [], scalar_prefetch = 0 : i64, scratch_operands = 3 : i64, tpu.core_type = #tpu.core_type<tc>} {
    %c0 = arith.constant 0 : index
    %c0_0 = arith.constant 0 : index
    %0 = vector.load %arg3[%c0, %c0_0] : memref<32x128xf32, #tpu.memory_space<vmem>>, vector<32x128xf32>
    %c0_1 = arith.constant 0 : index
    %c0_2 = arith.constant 0 : index
    %1 = vector.load %arg4[%c0_1, %c0_2] : memref<32x128xf32, #tpu.memory_space<vmem>>, vector<32x128xf32>
    %c0_3 = arith.constant 0 : index
    %c0_4 = arith.constant 0 : index
    %2 = vector.load %arg5[%c0_3, %c0_4] : memref<1x128xf32, #tpu.memory_space<vmem>>, vector<1x128xf32>
    %c0_5 = arith.constant 0 : index
    %c0_6 = arith.constant 0 : index
    %3 = vector.load %arg0[%c0_5, %c0_6] : memref<16x32xf32, #tpu.memory_space<vmem>>, vector<16x32xf32>
    %cst = arith.constant dense<0.000000e+00> : vector<16x128xf32>
    %4 = tpu.matmul %3, %0, %cst {dimension_numbers = #tpu.dot_dimension_numbers<[1], [0], [0], [1], [0, 0, 1, 1], [], []>} : vector<16x32xf32>, vector<32x128xf32>, vector<16x128xf32> -> vector<16x128xf32>
    %5 = vector.broadcast %2 : vector<1x128xf32> to vector<16x128xf32>
    %6 = arith.addf %4, %5 : vector<16x128xf32>
    %c0_7 = arith.constant 0 : index
    %c0_8 = arith.constant 0 : index
    %7 = vector.load %arg12[%c0_7, %c0_8] : memref<16x128xf32, #tpu.memory_space<vmem>>, vector<16x128xf32>
    tpu.vector_store %arg12[%c0_7, %c0_8], %6 {strides = array<i32>} : memref<16x128xf32, #tpu.memory_space<vmem>>, vector<16x128xf32>,
    %c0_9 = arith.constant 0 : index
    %c0_10 = arith.constant 0 : index
    %c0_11 = arith.constant 0 : index
    %8 = vector.load %arg1[%c0_9, %c0_10, %c0_11] : memref<2x2x32xf32, #tpu.memory_space<vmem>>, vector<1x2x32xf32>
    %9 = vector.shape_cast %8 : vector<1x2x32xf32> to vector<2x32xf32>
    %c0_12 = arith.constant 0 : index
    %c0_13 = arith.constant 0 : index
    %10 = vector.load %arg13[%c0_12, %c0_13] : memref<2x32xf32, #tpu.memory_space<vmem>>, vector<2x32xf32>
    tpu.vector_store %arg13[%c0_12, %c0_13], %9 {strides = array<i32>} : memref<2x32xf32, #tpu.memory_space<vmem>>, vector<2x32xf32>,
    %c0_14 = arith.constant 0 : index
    %c0_15 = arith.constant 0 : index
    %c0_16 = arith.constant 0 : index
    %11 = vector.load %arg2[%c0_14, %c0_15, %c0_16] : memref<2x2x32xf32, #tpu.memory_space<vmem>>, vector<1x2x32xf32>
    %12 = vector.shape_cast %11 : vector<1x2x32xf32> to vector<2x32xf32>
    %c0_17 = arith.constant 0 : index
    %c0_18 = arith.constant 0 : index
    %13 = vector.load %arg14[%c0_17, %c0_18] : memref<2x32xf32, #tpu.memory_space<vmem>>, vector<2x32xf32>
    tpu.vector_store %arg14[%c0_17, %c0_18], %12 {strides = array<i32>} : memref<2x32xf32, #tpu.memory_space<vmem>>, vector<2x32xf32>,
    %c0_i32 = arith.constant 0 : i32
    %c2_i32 = arith.constant 2 : i32
    %14 = arith.muli %c0_i32, %c2_i32 : i32
    %c0_19 = arith.constant 0 : index
    %c0_20 = arith.constant 0 : index
    %15 = vector.load %arg13[%c0_19, %c0_20] : memref<2x32xf32, #tpu.memory_space<vmem>>, vector<2x32xf32>
    %c0_21 = arith.constant 0 : index
    %c0_22 = arith.constant 0 : index
    %16 = vector.load %arg14[%c0_21, %c0_22] : memref<2x32xf32, #tpu.memory_space<vmem>>, vector<2x32xf32>
    %17 = arith.index_cast %14 : i32 to index
    %c0_23 = arith.constant 0 : index
    %18 = vector.load %arg12[%17, %c0_23] : memref<16x128xf32, #tpu.memory_space<vmem>>, vector<2x128xf32>
    %cst_24 = arith.constant dense<0.000000e+00> : vector<2x128xf32>
    %19 = tpu.matmul %15, %1, %cst_24 {dimension_numbers = #tpu.dot_dimension_numbers<[1], [0], [0], [1], [0, 0, 1, 1], [], []>} : vector<2x32xf32>, vector<32x128xf32>, vector<2x128xf32> -> vector<2x128xf32>
    %20 = arith.addf %18, %19 : vector<2x128xf32>
    %21 = vector.extract_strided_slice %20 {offsets = [0, 0], sizes = [2, 32], strides = [1, 1]} : vector<2x128xf32> to vector<2x32xf32>
    %22 = arith.negf %21 : vector<2x32xf32>
    %23 = math.exp %22 : vector<2x32xf32>
    %cst_25 = arith.constant 1.000000e+00 : f32
    %24 = vector.broadcast %cst_25 : f32 to vector<2x32xf32>
    %25 = arith.addf %24, %23 : vector<2x32xf32>
    %26 = arith.divf %24, %25 : vector<2x32xf32>
    %27 = vector.extract_strided_slice %20 {offsets = [0, 32], sizes = [2, 32], strides = [1, 1]} : vector<2x128xf32> to vector<2x32xf32>
    %28 = arith.negf %27 : vector<2x32xf32>
    %29 = math.exp %28 : vector<2x32xf32>
    %cst_26 = arith.constant 1.000000e+00 : f32
    %30 = vector.broadcast %cst_26 : f32 to vector<2x32xf32>
    %31 = arith.addf %30, %29 : vector<2x32xf32>
    %32 = arith.divf %30, %31 : vector<2x32xf32>
    %33 = vector.extract_strided_slice %20 {offsets = [0, 64], sizes = [2, 32], strides = [1, 1]} : vector<2x128xf32> to vector<2x32xf32>
    %34 = math.tanh %33 : vector<2x32xf32>
    %35 = vector.extract_strided_slice %20 {offsets = [0, 96], sizes = [2, 32], strides = [1, 1]} : vector<2x128xf32> to vector<2x32xf32>
    %36 = arith.negf %35 : vector<2x32xf32>
    %37 = math.exp %36 : vector<2x32xf32>
    %cst_27 = arith.constant 1.000000e+00 : f32
    %38 = vector.broadcast %cst_27 : f32 to vector<2x32xf32>
    %39 = arith.addf %38, %37 : vector<2x32xf32>
    %40 = arith.divf %38, %39 : vector<2x32xf32>
    %41 = arith.mulf %32, %16 : vector<2x32xf32>
    %42 = arith.mulf %26, %34 : vector<2x32xf32>
    %43 = arith.addf %41, %42 : vector<2x32xf32>
    %44 = math.tanh %43 : vector<2x32xf32>
    %45 = arith.mulf %40, %44 : vector<2x32xf32>
    %c0_28 = arith.constant 0 : index
    %c0_29 = arith.constant 0 : index
    %46 = vector.load %arg13[%c0_28, %c0_29] : memref<2x32xf32, #tpu.memory_space<vmem>>, vector<2x32xf32>
    tpu.vector_store %arg13[%c0_28, %c0_29], %45 {strides = array<i32>} : memref<2x32xf32, #tpu.memory_space<vmem>>, vector<2x32xf32>,
    %c0_30 = arith.constant 0 : index
    %c0_31 = arith.constant 0 : index
    %47 = vector.load %arg14[%c0_30, %c0_31] : memref<2x32xf32, #tpu.memory_space<vmem>>, vector<2x32xf32>
    tpu.vector_store %arg14[%c0_30, %c0_31], %43 {strides = array<i32>} : memref<2x32xf32, #tpu.memory_space<vmem>>, vector<2x32xf32>,
    %48 = arith.index_cast %14 : i32 to index
    %c0_32 = arith.constant 0 : index
    %49 = vector.load %arg9[%48, %c0_32] : memref<16x32xf32, #tpu.memory_space<vmem>>, vector<2x32xf32>
    tpu.vector_store %arg9[%48, %c0_32], %45 {strides = array<i32>} : memref<16x32xf32, #tpu.memory_space<vmem>>, vector<2x32xf32>,
    %c1_i32 = arith.constant 1 : i32
    %c2_i32_33 = arith.constant 2 : i32
    %50 = arith.muli %c1_i32, %c2_i32_33 : i32
    %c0_34 = arith.constant 0 : index
    %c0_35 = arith.constant 0 : index
    %51 = vector.load %arg13[%c0_34, %c0_35] : memref<2x32xf32, #tpu.memory_space<vmem>>, vector<2x32xf32>
    %c0_36 = arith.constant 0 : index
    %c0_37 = arith.constant 0 : index
    %52 = vector.load %arg14[%c0_36, %c0_37] : memref<2x32xf32, #tpu.memory_space<vmem>>, vector<2x32xf32>
    %53 = arith.index_cast %50 : i32 to index
    %c0_38 = arith.constant 0 : index
    %54 = vector.load %arg12[%53, %c0_38] : memref<16x128xf32, #tpu.memory_space<vmem>>, vector<2x128xf32>
    %cst_39 = arith.constant dense<0.000000e+00> : vector<2x128xf32>
    %55 = tpu.matmul %51, %1, %cst_39 {dimension_numbers = #tpu.dot_dimension_numbers<[1], [0], [0], [1], [0, 0, 1, 1], [], []>} : vector<2x32xf32>, vector<32x128xf32>, vector<2x128xf32> -> vector<2x128xf32>
    %56 = arith.addf %54, %55 : vector<2x128xf32>
    %57 = vector.extract_strided_slice %56 {offsets = [0, 0], sizes = [2, 32], strides = [1, 1]} : vector<2x128xf32> to vector<2x32xf32>
    %58 = arith.negf %57 : vector<2x32xf32>
    %59 = math.exp %58 : vector<2x32xf32>
    %cst_40 = arith.constant 1.000000e+00 : f32
    %60 = vector.broadcast %cst_40 : f32 to vector<2x32xf32>
    %61 = arith.addf %60, %59 : vector<2x32xf32>
    %62 = arith.divf %60, %61 : vector<2x32xf32>
    %63 = vector.extract_strided_slice %56 {offsets = [0, 32], sizes = [2, 32], strides = [1, 1]} : vector<2x128xf32> to vector<2x32xf32>
    %64 = arith.negf %63 : vector<2x32xf32>
    %65 = math.exp %64 : vector<2x32xf32>
    %cst_41 = arith.constant 1.000000e+00 : f32
    %66 = vector.broadcast %cst_41 : f32 to vector<2x32xf32>
    %67 = arith.addf %66, %65 : vector<2x32xf32>
    %68 = arith.divf %66, %67 : vector<2x32xf32>
    %69 = vector.extract_strided_slice %56 {offsets = [0, 64], sizes = [2, 32], strides = [1, 1]} : vector<2x128xf32> to vector<2x32xf32>
    %70 = math.tanh %69 : vector<2x32xf32>
    %71 = vector.extract_strided_slice %56 {offsets = [0, 96], sizes = [2, 32], strides = [1, 1]} : vector<2x128xf32> to vector<2x32xf32>
    %72 = arith.negf %71 : vector<2x32xf32>
    %73 = math.exp %72 : vector<2x32xf32>
    %cst_42 = arith.constant 1.000000e+00 : f32
    %74 = vector.broadcast %cst_42 : f32 to vector<2x32xf32>
    %75 = arith.addf %74, %73 : vector<2x32xf32>
    %76 = arith.divf %74, %75 : vector<2x32xf32>
    %77 = arith.mulf %68, %52 : vector<2x32xf32>
    %78 = arith.mulf %62, %70 : vector<2x32xf32>
    %79 = arith.addf %77, %78 : vector<2x32xf32>
    %80 = math.tanh %79 : vector<2x32xf32>
    %81 = arith.mulf %76, %80 : vector<2x32xf32>
    %c0_43 = arith.constant 0 : index
    %c0_44 = arith.constant 0 : index
    %82 = vector.load %arg13[%c0_43, %c0_44] : memref<2x32xf32, #tpu.memory_space<vmem>>, vector<2x32xf32>
    tpu.vector_store %arg13[%c0_43, %c0_44], %81 {strides = array<i32>} : memref<2x32xf32, #tpu.memory_space<vmem>>, vector<2x32xf32>,
    %c0_45 = arith.constant 0 : index
    %c0_46 = arith.constant 0 : index
    %83 = vector.load %arg14[%c0_45, %c0_46] : memref<2x32xf32, #tpu.memory_space<vmem>>, vector<2x32xf32>
    tpu.vector_store %arg14[%c0_45, %c0_46], %79 {strides = array<i32>} : memref<2x32xf32, #tpu.memory_space<vmem>>, vector<2x32xf32>,
    %84 = arith.index_cast %50 : i32 to index
    %c0_47 = arith.constant 0 : index
    %85 = vector.load %arg9[%84, %c0_47] : memref<16x32xf32, #tpu.memory_space<vmem>>, vector<2x32xf32>
    tpu.vector_store %arg9[%84, %c0_47], %81 {strides = array<i32>} : memref<16x32xf32, #tpu.memory_space<vmem>>, vector<2x32xf32>,
    %c2_i32_48 = arith.constant 2 : i32
    %c2_i32_49 = arith.constant 2 : i32
    %86 = arith.muli %c2_i32_48, %c2_i32_49 : i32
    %c0_50 = arith.constant 0 : index
    %c0_51 = arith.constant 0 : index
    %87 = vector.load %arg13[%c0_50, %c0_51] : memref<2x32xf32, #tpu.memory_space<vmem>>, vector<2x32xf32>
    %c0_52 = arith.constant 0 : index
    %c0_53 = arith.constant 0 : index
    %88 = vector.load %arg14[%c0_52, %c0_53] : memref<2x32xf32, #tpu.memory_space<vmem>>, vector<2x32xf32>
    %89 = arith.index_cast %86 : i32 to index
    %c0_54 = arith.constant 0 : index
    %90 = vector.load %arg12[%89, %c0_54] : memref<16x128xf32, #tpu.memory_space<vmem>>, vector<2x128xf32>
    %cst_55 = arith.constant dense<0.000000e+00> : vector<2x128xf32>
    %91 = tpu.matmul %87, %1, %cst_55 {dimension_numbers = #tpu.dot_dimension_numbers<[1], [0], [0], [1], [0, 0, 1, 1], [], []>} : vector<2x32xf32>, vector<32x128xf32>, vector<2x128xf32> -> vector<2x128xf32>
    %92 = arith.addf %90, %91 : vector<2x128xf32>
    %93 = vector.extract_strided_slice %92 {offsets = [0, 0], sizes = [2, 32], strides = [1, 1]} : vector<2x128xf32> to vector<2x32xf32>
    %94 = arith.negf %93 : vector<2x32xf32>
    %95 = math.exp %94 : vector<2x32xf32>
    %cst_56 = arith.constant 1.000000e+00 : f32
    %96 = vector.broadcast %cst_56 : f32 to vector<2x32xf32>
    %97 = arith.addf %96, %95 : vector<2x32xf32>
    %98 = arith.divf %96, %97 : vector<2x32xf32>
    %99 = vector.extract_strided_slice %92 {offsets = [0, 32], sizes = [2, 32], strides = [1, 1]} : vector<2x128xf32> to vector<2x32xf32>
    %100 = arith.negf %99 : vector<2x32xf32>
    %101 = math.exp %100 : vector<2x32xf32>
    %cst_57 = arith.constant 1.000000e+00 : f32
    %102 = vector.broadcast %cst_57 : f32 to vector<2x32xf32>
    %103 = arith.addf %102, %101 : vector<2x32xf32>
    %104 = arith.divf %102, %103 : vector<2x32xf32>
    %105 = vector.extract_strided_slice %92 {offsets = [0, 64], sizes = [2, 32], strides = [1, 1]} : vector<2x128xf32> to vector<2x32xf32>
    %106 = math.tanh %105 : vector<2x32xf32>
    %107 = vector.extract_strided_slice %92 {offsets = [0, 96], sizes = [2, 32], strides = [1, 1]} : vector<2x128xf32> to vector<2x32xf32>
    %108 = arith.negf %107 : vector<2x32xf32>
    %109 = math.exp %108 : vector<2x32xf32>
    %cst_58 = arith.constant 1.000000e+00 : f32
    %110 = vector.broadcast %cst_58 : f32 to vector<2x32xf32>
    %111 = arith.addf %110, %109 : vector<2x32xf32>
    %112 = arith.divf %110, %111 : vector<2x32xf32>
    %113 = arith.mulf %104, %88 : vector<2x32xf32>
    %114 = arith.mulf %98, %106 : vector<2x32xf32>
    %115 = arith.addf %113, %114 : vector<2x32xf32>
    %116 = math.tanh %115 : vector<2x32xf32>
    %117 = arith.mulf %112, %116 : vector<2x32xf32>
    %c0_59 = arith.constant 0 : index
    %c0_60 = arith.constant 0 : index
    %118 = vector.load %arg13[%c0_59, %c0_60] : memref<2x32xf32, #tpu.memory_space<vmem>>, vector<2x32xf32>
    tpu.vector_store %arg13[%c0_59, %c0_60], %117 {strides = array<i32>} : memref<2x32xf32, #tpu.memory_space<vmem>>, vector<2x32xf32>,
    %c0_61 = arith.constant 0 : index
    %c0_62 = arith.constant 0 : index
    %119 = vector.load %arg14[%c0_61, %c0_62] : memref<2x32xf32, #tpu.memory_space<vmem>>, vector<2x32xf32>
    tpu.vector_store %arg14[%c0_61, %c0_62], %115 {strides = array<i32>} : memref<2x32xf32, #tpu.memory_space<vmem>>, vector<2x32xf32>,
    %120 = arith.index_cast %86 : i32 to index
    %c0_63 = arith.constant 0 : index
    %121 = vector.load %arg9[%120, %c0_63] : memref<16x32xf32, #tpu.memory_space<vmem>>, vector<2x32xf32>
    tpu.vector_store %arg9[%120, %c0_63], %117 {strides = array<i32>} : memref<16x32xf32, #tpu.memory_space<vmem>>, vector<2x32xf32>,
    %c3_i32 = arith.constant 3 : i32
    %c2_i32_64 = arith.constant 2 : i32
    %122 = arith.muli %c3_i32, %c2_i32_64 : i32
    %c0_65 = arith.constant 0 : index
    %c0_66 = arith.constant 0 : index
    %123 = vector.load %arg13[%c0_65, %c0_66] : memref<2x32xf32, #tpu.memory_space<vmem>>, vector<2x32xf32>
    %c0_67 = arith.constant 0 : index
    %c0_68 = arith.constant 0 : index
    %124 = vector.load %arg14[%c0_67, %c0_68] : memref<2x32xf32, #tpu.memory_space<vmem>>, vector<2x32xf32>
    %125 = arith.index_cast %122 : i32 to index
    %c0_69 = arith.constant 0 : index
    %126 = vector.load %arg12[%125, %c0_69] : memref<16x128xf32, #tpu.memory_space<vmem>>, vector<2x128xf32>
    %cst_70 = arith.constant dense<0.000000e+00> : vector<2x128xf32>
    %127 = tpu.matmul %123, %1, %cst_70 {dimension_numbers = #tpu.dot_dimension_numbers<[1], [0], [0], [1], [0, 0, 1, 1], [], []>} : vector<2x32xf32>, vector<32x128xf32>, vector<2x128xf32> -> vector<2x128xf32>
    %128 = arith.addf %126, %127 : vector<2x128xf32>
    %129 = vector.extract_strided_slice %128 {offsets = [0, 0], sizes = [2, 32], strides = [1, 1]} : vector<2x128xf32> to vector<2x32xf32>
    %130 = arith.negf %129 : vector<2x32xf32>
    %131 = math.exp %130 : vector<2x32xf32>
    %cst_71 = arith.constant 1.000000e+00 : f32
    %132 = vector.broadcast %cst_71 : f32 to vector<2x32xf32>
    %133 = arith.addf %132, %131 : vector<2x32xf32>
    %134 = arith.divf %132, %133 : vector<2x32xf32>
    %135 = vector.extract_strided_slice %128 {offsets = [0, 32], sizes = [2, 32], strides = [1, 1]} : vector<2x128xf32> to vector<2x32xf32>
    %136 = arith.negf %135 : vector<2x32xf32>
    %137 = math.exp %136 : vector<2x32xf32>
    %cst_72 = arith.constant 1.000000e+00 : f32
    %138 = vector.broadcast %cst_72 : f32 to vector<2x32xf32>
    %139 = arith.addf %138, %137 : vector<2x32xf32>
    %140 = arith.divf %138, %139 : vector<2x32xf32>
    %141 = vector.extract_strided_slice %128 {offsets = [0, 64], sizes = [2, 32], strides = [1, 1]} : vector<2x128xf32> to vector<2x32xf32>
    %142 = math.tanh %141 : vector<2x32xf32>
    %143 = vector.extract_strided_slice %128 {offsets = [0, 96], sizes = [2, 32], strides = [1, 1]} : vector<2x128xf32> to vector<2x32xf32>
    %144 = arith.negf %143 : vector<2x32xf32>
    %145 = math.exp %144 : vector<2x32xf32>
    %cst_73 = arith.constant 1.000000e+00 : f32
    %146 = vector.broadcast %cst_73 : f32 to vector<2x32xf32>
    %147 = arith.addf %146, %145 : vector<2x32xf32>
    %148 = arith.divf %146, %147 : vector<2x32xf32>
    %149 = arith.mulf %140, %124 : vector<2x32xf32>
    %150 = arith.mulf %134, %142 : vector<2x32xf32>
    %151 = arith.addf %149, %150 : vector<2x32xf32>
    %152 = math.tanh %151 : vector<2x32xf32>
    %153 = arith.mulf %148, %152 : vector<2x32xf32>
    %c0_74 = arith.constant 0 : index
    %c0_75 = arith.constant 0 : index
    %154 = vector.load %arg13[%c0_74, %c0_75] : memref<2x32xf32, #tpu.memory_space<vmem>>, vector<2x32xf32>
    tpu.vector_store %arg13[%c0_74, %c0_75], %153 {strides = array<i32>} : memref<2x32xf32, #tpu.memory_space<vmem>>, vector<2x32xf32>,
    %c0_76 = arith.constant 0 : index
    %c0_77 = arith.constant 0 : index
    %155 = vector.load %arg14[%c0_76, %c0_77] : memref<2x32xf32, #tpu.memory_space<vmem>>, vector<2x32xf32>
    tpu.vector_store %arg14[%c0_76, %c0_77], %151 {strides = array<i32>} : memref<2x32xf32, #tpu.memory_space<vmem>>, vector<2x32xf32>,
    %156 = arith.index_cast %122 : i32 to index
    %c0_78 = arith.constant 0 : index
    %157 = vector.load %arg9[%156, %c0_78] : memref<16x32xf32, #tpu.memory_space<vmem>>, vector<2x32xf32>
    tpu.vector_store %arg9[%156, %c0_78], %153 {strides = array<i32>} : memref<16x32xf32, #tpu.memory_space<vmem>>, vector<2x32xf32>,
    %c4_i32 = arith.constant 4 : i32
    %c2_i32_79 = arith.constant 2 : i32
    %158 = arith.muli %c4_i32, %c2_i32_79 : i32
    %c0_80 = arith.constant 0 : index
    %c0_81 = arith.constant 0 : index
    %159 = vector.load %arg13[%c0_80, %c0_81] : memref<2x32xf32, #tpu.memory_space<vmem>>, vector<2x32xf32>
    %c0_82 = arith.constant 0 : index
    %c0_83 = arith.constant 0 : index
    %160 = vector.load %arg14[%c0_82, %c0_83] : memref<2x32xf32, #tpu.memory_space<vmem>>, vector<2x32xf32>
    %161 = arith.index_cast %158 : i32 to index
    %c0_84 = arith.constant 0 : index
    %162 = vector.load %arg12[%161, %c0_84] : memref<16x128xf32, #tpu.memory_space<vmem>>, vector<2x128xf32>
    %cst_85 = arith.constant dense<0.000000e+00> : vector<2x128xf32>
    %163 = tpu.matmul %159, %1, %cst_85 {dimension_numbers = #tpu.dot_dimension_numbers<[1], [0], [0], [1], [0, 0, 1, 1], [], []>} : vector<2x32xf32>, vector<32x128xf32>, vector<2x128xf32> -> vector<2x128xf32>
    %164 = arith.addf %162, %163 : vector<2x128xf32>
    %165 = vector.extract_strided_slice %164 {offsets = [0, 0], sizes = [2, 32], strides = [1, 1]} : vector<2x128xf32> to vector<2x32xf32>
    %166 = arith.negf %165 : vector<2x32xf32>
    %167 = math.exp %166 : vector<2x32xf32>
    %cst_86 = arith.constant 1.000000e+00 : f32
    %168 = vector.broadcast %cst_86 : f32 to vector<2x32xf32>
    %169 = arith.addf %168, %167 : vector<2x32xf32>
    %170 = arith.divf %168, %169 : vector<2x32xf32>
    %171 = vector.extract_strided_slice %164 {offsets = [0, 32], sizes = [2, 32], strides = [1, 1]} : vector<2x128xf32> to vector<2x32xf32>
    %172 = arith.negf %171 : vector<2x32xf32>
    %173 = math.exp %172 : vector<2x32xf32>
    %cst_87 = arith.constant 1.000000e+00 : f32
    %174 = vector.broadcast %cst_87 : f32 to vector<2x32xf32>
    %175 = arith.addf %174, %173 : vector<2x32xf32>
    %176 = arith.divf %174, %175 : vector<2x32xf32>
    %177 = vector.extract_strided_slice %164 {offsets = [0, 64], sizes = [2, 32], strides = [1, 1]} : vector<2x128xf32> to vector<2x32xf32>
    %178 = math.tanh %177 : vector<2x32xf32>
    %179 = vector.extract_strided_slice %164 {offsets = [0, 96], sizes = [2, 32], strides = [1, 1]} : vector<2x128xf32> to vector<2x32xf32>
    %180 = arith.negf %179 : vector<2x32xf32>
    %181 = math.exp %180 : vector<2x32xf32>
    %cst_88 = arith.constant 1.000000e+00 : f32
    %182 = vector.broadcast %cst_88 : f32 to vector<2x32xf32>
    %183 = arith.addf %182, %181 : vector<2x32xf32>
    %184 = arith.divf %182, %183 : vector<2x32xf32>
    %185 = arith.mulf %176, %160 : vector<2x32xf32>
    %186 = arith.mulf %170, %178 : vector<2x32xf32>
    %187 = arith.addf %185, %186 : vector<2x32xf32>
    %188 = math.tanh %187 : vector<2x32xf32>
    %189 = arith.mulf %184, %188 : vector<2x32xf32>
    %c0_89 = arith.constant 0 : index
    %c0_90 = arith.constant 0 : index
    %190 = vector.load %arg13[%c0_89, %c0_90] : memref<2x32xf32, #tpu.memory_space<vmem>>, vector<2x32xf32>
    tpu.vector_store %arg13[%c0_89, %c0_90], %189 {strides = array<i32>} : memref<2x32xf32, #tpu.memory_space<vmem>>, vector<2x32xf32>,
    %c0_91 = arith.constant 0 : index
    %c0_92 = arith.constant 0 : index
    %191 = vector.load %arg14[%c0_91, %c0_92] : memref<2x32xf32, #tpu.memory_space<vmem>>, vector<2x32xf32>
    tpu.vector_store %arg14[%c0_91, %c0_92], %187 {strides = array<i32>} : memref<2x32xf32, #tpu.memory_space<vmem>>, vector<2x32xf32>,
    %192 = arith.index_cast %158 : i32 to index
    %c0_93 = arith.constant 0 : index
    %193 = vector.load %arg9[%192, %c0_93] : memref<16x32xf32, #tpu.memory_space<vmem>>, vector<2x32xf32>
    tpu.vector_store %arg9[%192, %c0_93], %189 {strides = array<i32>} : memref<16x32xf32, #tpu.memory_space<vmem>>, vector<2x32xf32>,
    %c5_i32 = arith.constant 5 : i32
    %c2_i32_94 = arith.constant 2 : i32
    %194 = arith.muli %c5_i32, %c2_i32_94 : i32
    %c0_95 = arith.constant 0 : index
    %c0_96 = arith.constant 0 : index
    %195 = vector.load %arg13[%c0_95, %c0_96] : memref<2x32xf32, #tpu.memory_space<vmem>>, vector<2x32xf32>
    %c0_97 = arith.constant 0 : index
    %c0_98 = arith.constant 0 : index
    %196 = vector.load %arg14[%c0_97, %c0_98] : memref<2x32xf32, #tpu.memory_space<vmem>>, vector<2x32xf32>
    %197 = arith.index_cast %194 : i32 to index
    %c0_99 = arith.constant 0 : index
    %198 = vector.load %arg12[%197, %c0_99] : memref<16x128xf32, #tpu.memory_space<vmem>>, vector<2x128xf32>
    %cst_100 = arith.constant dense<0.000000e+00> : vector<2x128xf32>
    %199 = tpu.matmul %195, %1, %cst_100 {dimension_numbers = #tpu.dot_dimension_numbers<[1], [0], [0], [1], [0, 0, 1, 1], [], []>} : vector<2x32xf32>, vector<32x128xf32>, vector<2x128xf32> -> vector<2x128xf32>
    %200 = arith.addf %198, %199 : vector<2x128xf32>
    %201 = vector.extract_strided_slice %200 {offsets = [0, 0], sizes = [2, 32], strides = [1, 1]} : vector<2x128xf32> to vector<2x32xf32>
    %202 = arith.negf %201 : vector<2x32xf32>
    %203 = math.exp %202 : vector<2x32xf32>
    %cst_101 = arith.constant 1.000000e+00 : f32
    %204 = vector.broadcast %cst_101 : f32 to vector<2x32xf32>
    %205 = arith.addf %204, %203 : vector<2x32xf32>
    %206 = arith.divf %204, %205 : vector<2x32xf32>
    %207 = vector.extract_strided_slice %200 {offsets = [0, 32], sizes = [2, 32], strides = [1, 1]} : vector<2x128xf32> to vector<2x32xf32>
    %208 = arith.negf %207 : vector<2x32xf32>
    %209 = math.exp %208 : vector<2x32xf32>
    %cst_102 = arith.constant 1.000000e+00 : f32
    %210 = vector.broadcast %cst_102 : f32 to vector<2x32xf32>
    %211 = arith.addf %210, %209 : vector<2x32xf32>
    %212 = arith.divf %210, %211 : vector<2x32xf32>
    %213 = vector.extract_strided_slice %200 {offsets = [0, 64], sizes = [2, 32], strides = [1, 1]} : vector<2x128xf32> to vector<2x32xf32>
    %214 = math.tanh %213 : vector<2x32xf32>
    %215 = vector.extract_strided_slice %200 {offsets = [0, 96], sizes = [2, 32], strides = [1, 1]} : vector<2x128xf32> to vector<2x32xf32>
    %216 = arith.negf %215 : vector<2x32xf32>
    %217 = math.exp %216 : vector<2x32xf32>
    %cst_103 = arith.constant 1.000000e+00 : f32
    %218 = vector.broadcast %cst_103 : f32 to vector<2x32xf32>
    %219 = arith.addf %218, %217 : vector<2x32xf32>
    %220 = arith.divf %218, %219 : vector<2x32xf32>
    %221 = arith.mulf %212, %196 : vector<2x32xf32>
    %222 = arith.mulf %206, %214 : vector<2x32xf32>
    %223 = arith.addf %221, %222 : vector<2x32xf32>
    %224 = math.tanh %223 : vector<2x32xf32>
    %225 = arith.mulf %220, %224 : vector<2x32xf32>
    %c0_104 = arith.constant 0 : index
    %c0_105 = arith.constant 0 : index
    %226 = vector.load %arg13[%c0_104, %c0_105] : memref<2x32xf32, #tpu.memory_space<vmem>>, vector<2x32xf32>
    tpu.vector_store %arg13[%c0_104, %c0_105], %225 {strides = array<i32>} : memref<2x32xf32, #tpu.memory_space<vmem>>, vector<2x32xf32>,
    %c0_106 = arith.constant 0 : index
    %c0_107 = arith.constant 0 : index
    %227 = vector.load %arg14[%c0_106, %c0_107] : memref<2x32xf32, #tpu.memory_space<vmem>>, vector<2x32xf32>
    tpu.vector_store %arg14[%c0_106, %c0_107], %223 {strides = array<i32>} : memref<2x32xf32, #tpu.memory_space<vmem>>, vector<2x32xf32>,
    %228 = arith.index_cast %194 : i32 to index
    %c0_108 = arith.constant 0 : index
    %229 = vector.load %arg9[%228, %c0_108] : memref<16x32xf32, #tpu.memory_space<vmem>>, vector<2x32xf32>
    tpu.vector_store %arg9[%228, %c0_108], %225 {strides = array<i32>} : memref<16x32xf32, #tpu.memory_space<vmem>>, vector<2x32xf32>,
    %c6_i32 = arith.constant 6 : i32
    %c2_i32_109 = arith.constant 2 : i32
    %230 = arith.muli %c6_i32, %c2_i32_109 : i32
    %c0_110 = arith.constant 0 : index
    %c0_111 = arith.constant 0 : index
    %231 = vector.load %arg13[%c0_110, %c0_111] : memref<2x32xf32, #tpu.memory_space<vmem>>, vector<2x32xf32>
    %c0_112 = arith.constant 0 : index
    %c0_113 = arith.constant 0 : index
    %232 = vector.load %arg14[%c0_112, %c0_113] : memref<2x32xf32, #tpu.memory_space<vmem>>, vector<2x32xf32>
    %233 = arith.index_cast %230 : i32 to index
    %c0_114 = arith.constant 0 : index
    %234 = vector.load %arg12[%233, %c0_114] : memref<16x128xf32, #tpu.memory_space<vmem>>, vector<2x128xf32>
    %cst_115 = arith.constant dense<0.000000e+00> : vector<2x128xf32>
    %235 = tpu.matmul %231, %1, %cst_115 {dimension_numbers = #tpu.dot_dimension_numbers<[1], [0], [0], [1], [0, 0, 1, 1], [], []>} : vector<2x32xf32>, vector<32x128xf32>, vector<2x128xf32> -> vector<2x128xf32>
    %236 = arith.addf %234, %235 : vector<2x128xf32>
    %237 = vector.extract_strided_slice %236 {offsets = [0, 0], sizes = [2, 32], strides = [1, 1]} : vector<2x128xf32> to vector<2x32xf32>
    %238 = arith.negf %237 : vector<2x32xf32>
    %239 = math.exp %238 : vector<2x32xf32>
    %cst_116 = arith.constant 1.000000e+00 : f32
    %240 = vector.broadcast %cst_116 : f32 to vector<2x32xf32>
    %241 = arith.addf %240, %239 : vector<2x32xf32>
    %242 = arith.divf %240, %241 : vector<2x32xf32>
    %243 = vector.extract_strided_slice %236 {offsets = [0, 32], sizes = [2, 32], strides = [1, 1]} : vector<2x128xf32> to vector<2x32xf32>
    %244 = arith.negf %243 : vector<2x32xf32>
    %245 = math.exp %244 : vector<2x32xf32>
    %cst_117 = arith.constant 1.000000e+00 : f32
    %246 = vector.broadcast %cst_117 : f32 to vector<2x32xf32>
    %247 = arith.addf %246, %245 : vector<2x32xf32>
    %248 = arith.divf %246, %247 : vector<2x32xf32>
    %249 = vector.extract_strided_slice %236 {offsets = [0, 64], sizes = [2, 32], strides = [1, 1]} : vector<2x128xf32> to vector<2x32xf32>
    %250 = math.tanh %249 : vector<2x32xf32>
    %251 = vector.extract_strided_slice %236 {offsets = [0, 96], sizes = [2, 32], strides = [1, 1]} : vector<2x128xf32> to vector<2x32xf32>
    %252 = arith.negf %251 : vector<2x32xf32>
    %253 = math.exp %252 : vector<2x32xf32>
    %cst_118 = arith.constant 1.000000e+00 : f32
    %254 = vector.broadcast %cst_118 : f32 to vector<2x32xf32>
    %255 = arith.addf %254, %253 : vector<2x32xf32>
    %256 = arith.divf %254, %255 : vector<2x32xf32>
    %257 = arith.mulf %248, %232 : vector<2x32xf32>
    %258 = arith.mulf %242, %250 : vector<2x32xf32>
    %259 = arith.addf %257, %258 : vector<2x32xf32>
    %260 = math.tanh %259 : vector<2x32xf32>
    %261 = arith.mulf %256, %260 : vector<2x32xf32>
    %c0_119 = arith.constant 0 : index
    %c0_120 = arith.constant 0 : index
    %262 = vector.load %arg13[%c0_119, %c0_120] : memref<2x32xf32, #tpu.memory_space<vmem>>, vector<2x32xf32>
    tpu.vector_store %arg13[%c0_119, %c0_120], %261 {strides = array<i32>} : memref<2x32xf32, #tpu.memory_space<vmem>>, vector<2x32xf32>,
    %c0_121 = arith.constant 0 : index
    %c0_122 = arith.constant 0 : index
    %263 = vector.load %arg14[%c0_121, %c0_122] : memref<2x32xf32, #tpu.memory_space<vmem>>, vector<2x32xf32>
    tpu.vector_store %arg14[%c0_121, %c0_122], %259 {strides = array<i32>} : memref<2x32xf32, #tpu.memory_space<vmem>>, vector<2x32xf32>,
    %264 = arith.index_cast %230 : i32 to index
    %c0_123 = arith.constant 0 : index
    %265 = vector.load %arg9[%264, %c0_123] : memref<16x32xf32, #tpu.memory_space<vmem>>, vector<2x32xf32>
    tpu.vector_store %arg9[%264, %c0_123], %261 {strides = array<i32>} : memref<16x32xf32, #tpu.memory_space<vmem>>, vector<2x32xf32>,
    %c7_i32 = arith.constant 7 : i32
    %c2_i32_124 = arith.constant 2 : i32
    %266 = arith.muli %c7_i32, %c2_i32_124 : i32
    %c0_125 = arith.constant 0 : index
    %c0_126 = arith.constant 0 : index
    %267 = vector.load %arg13[%c0_125, %c0_126] : memref<2x32xf32, #tpu.memory_space<vmem>>, vector<2x32xf32>
    %c0_127 = arith.constant 0 : index
    %c0_128 = arith.constant 0 : index
    %268 = vector.load %arg14[%c0_127, %c0_128] : memref<2x32xf32, #tpu.memory_space<vmem>>, vector<2x32xf32>
    %269 = arith.index_cast %266 : i32 to index
    %c0_129 = arith.constant 0 : index
    %270 = vector.load %arg12[%269, %c0_129] : memref<16x128xf32, #tpu.memory_space<vmem>>, vector<2x128xf32>
    %cst_130 = arith.constant dense<0.000000e+00> : vector<2x128xf32>
    %271 = tpu.matmul %267, %1, %cst_130 {dimension_numbers = #tpu.dot_dimension_numbers<[1], [0], [0], [1], [0, 0, 1, 1], [], []>} : vector<2x32xf32>, vector<32x128xf32>, vector<2x128xf32> -> vector<2x128xf32>
    %272 = arith.addf %270, %271 : vector<2x128xf32>
    %273 = vector.extract_strided_slice %272 {offsets = [0, 0], sizes = [2, 32], strides = [1, 1]} : vector<2x128xf32> to vector<2x32xf32>
    %274 = arith.negf %273 : vector<2x32xf32>
    %275 = math.exp %274 : vector<2x32xf32>
    %cst_131 = arith.constant 1.000000e+00 : f32
    %276 = vector.broadcast %cst_131 : f32 to vector<2x32xf32>
    %277 = arith.addf %276, %275 : vector<2x32xf32>
    %278 = arith.divf %276, %277 : vector<2x32xf32>
    %279 = vector.extract_strided_slice %272 {offsets = [0, 32], sizes = [2, 32], strides = [1, 1]} : vector<2x128xf32> to vector<2x32xf32>
    %280 = arith.negf %279 : vector<2x32xf32>
    %281 = math.exp %280 : vector<2x32xf32>
    %cst_132 = arith.constant 1.000000e+00 : f32
    %282 = vector.broadcast %cst_132 : f32 to vector<2x32xf32>
    %283 = arith.addf %282, %281 : vector<2x32xf32>
    %284 = arith.divf %282, %283 : vector<2x32xf32>
    %285 = vector.extract_strided_slice %272 {offsets = [0, 64], sizes = [2, 32], strides = [1, 1]} : vector<2x128xf32> to vector<2x32xf32>
    %286 = math.tanh %285 : vector<2x32xf32>
    %287 = vector.extract_strided_slice %272 {offsets = [0, 96], sizes = [2, 32], strides = [1, 1]} : vector<2x128xf32> to vector<2x32xf32>
    %288 = arith.negf %287 : vector<2x32xf32>
    %289 = math.exp %288 : vector<2x32xf32>
    %cst_133 = arith.constant 1.000000e+00 : f32
    %290 = vector.broadcast %cst_133 : f32 to vector<2x32xf32>
    %291 = arith.addf %290, %289 : vector<2x32xf32>
    %292 = arith.divf %290, %291 : vector<2x32xf32>
    %293 = arith.mulf %284, %268 : vector<2x32xf32>
    %294 = arith.mulf %278, %286 : vector<2x32xf32>
    %295 = arith.addf %293, %294 : vector<2x32xf32>
    %296 = math.tanh %295 : vector<2x32xf32>
    %297 = arith.mulf %292, %296 : vector<2x32xf32>
    %c0_134 = arith.constant 0 : index
    %c0_135 = arith.constant 0 : index
    %298 = vector.load %arg13[%c0_134, %c0_135] : memref<2x32xf32, #tpu.memory_space<vmem>>, vector<2x32xf32>
    tpu.vector_store %arg13[%c0_134, %c0_135], %297 {strides = array<i32>} : memref<2x32xf32, #tpu.memory_space<vmem>>, vector<2x32xf32>,
    %c0_136 = arith.constant 0 : index
    %c0_137 = arith.constant 0 : index
    %299 = vector.load %arg14[%c0_136, %c0_137] : memref<2x32xf32, #tpu.memory_space<vmem>>, vector<2x32xf32>
    tpu.vector_store %arg14[%c0_136, %c0_137], %295 {strides = array<i32>} : memref<2x32xf32, #tpu.memory_space<vmem>>, vector<2x32xf32>,
    %300 = arith.index_cast %266 : i32 to index
    %c0_138 = arith.constant 0 : index
    %301 = vector.load %arg9[%300, %c0_138] : memref<16x32xf32, #tpu.memory_space<vmem>>, vector<2x32xf32>
    tpu.vector_store %arg9[%300, %c0_138], %297 {strides = array<i32>} : memref<16x32xf32, #tpu.memory_space<vmem>>, vector<2x32xf32>,
    %c8_i32 = arith.constant 8 : i32
    %c0_139 = arith.constant 0 : index
    %c0_140 = arith.constant 0 : index
    %302 = vector.load %arg13[%c0_139, %c0_140] : memref<2x32xf32, #tpu.memory_space<vmem>>, vector<2x32xf32>
    %c0_141 = arith.constant 0 : index
    %c0_142 = arith.constant 0 : index
    %c0_143 = arith.constant 0 : index
    %303 = vector.load %arg10[%c0_141, %c0_142, %c0_143] : memref<2x2x32xf32, #tpu.memory_space<vmem>>, vector<1x2x32xf32>
    %304 = vector.shape_cast %303 : vector<1x2x32xf32> to vector<2x32xf32>
    %305 = vector.shape_cast %302 : vector<2x32xf32> to vector<1x2x32xf32>
    tpu.vector_store %arg10[%c0_141, %c0_142, %c0_143], %305 {strides = array<i32>} : memref<2x2x32xf32, #tpu.memory_space<vmem>>, vector<1x2x32xf32>,
    %c0_144 = arith.constant 0 : index
    %c0_145 = arith.constant 0 : index
    %306 = vector.load %arg14[%c0_144, %c0_145] : memref<2x32xf32, #tpu.memory_space<vmem>>, vector<2x32xf32>
    %c0_146 = arith.constant 0 : index
    %c0_147 = arith.constant 0 : index
    %c0_148 = arith.constant 0 : index
    %307 = vector.load %arg11[%c0_146, %c0_147, %c0_148] : memref<2x2x32xf32, #tpu.memory_space<vmem>>, vector<1x2x32xf32>
    %308 = vector.shape_cast %307 : vector<1x2x32xf32> to vector<2x32xf32>
    %309 = vector.shape_cast %306 : vector<2x32xf32> to vector<1x2x32xf32>
    tpu.vector_store %arg11[%c0_146, %c0_147, %c0_148], %309 {strides = array<i32>} : memref<2x2x32xf32, #tpu.memory_space<vmem>>, vector<1x2x32xf32>,
    %c0_149 = arith.constant 0 : index
    %c0_150 = arith.constant 0 : index
    %310 = vector.load %arg6[%c0_149, %c0_150] : memref<32x128xf32, #tpu.memory_space<vmem>>, vector<32x128xf32>
    %c0_151 = arith.constant 0 : index
    %c0_152 = arith.constant 0 : index
    %311 = vector.load %arg7[%c0_151, %c0_152] : memref<32x128xf32, #tpu.memory_space<vmem>>, vector<32x128xf32>
    %c0_153 = arith.constant 0 : index
    %c0_154 = arith.constant 0 : index
    %312 = vector.load %arg8[%c0_153, %c0_154] : memref<1x128xf32, #tpu.memory_space<vmem>>, vector<1x128xf32>
    %c0_155 = arith.constant 0 : index
    %c0_156 = arith.constant 0 : index
    %313 = vector.load %arg9[%c0_155, %c0_156] : memref<16x32xf32, #tpu.memory_space<vmem>>, vector<16x32xf32>
    %cst_157 = arith.constant dense<0.000000e+00> : vector<16x128xf32>
    %314 = tpu.matmul %313, %310, %cst_157 {dimension_numbers = #tpu.dot_dimension_numbers<[1], [0], [0], [1], [0, 0, 1, 1], [], []>} : vector<16x32xf32>, vector<32x128xf32>, vector<16x128xf32> -> vector<16x128xf32>
    %315 = vector.broadcast %312 : vector<1x128xf32> to vector<16x128xf32>
    %316 = arith.addf %314, %315 : vector<16x128xf32>
    %c0_158 = arith.constant 0 : index
    %c0_159 = arith.constant 0 : index
    %317 = vector.load %arg12[%c0_158, %c0_159] : memref<16x128xf32, #tpu.memory_space<vmem>>, vector<16x128xf32>
    tpu.vector_store %arg12[%c0_158, %c0_159], %316 {strides = array<i32>} : memref<16x128xf32, #tpu.memory_space<vmem>>, vector<16x128xf32>,
    %c1 = arith.constant 1 : index
    %c0_160 = arith.constant 0 : index
    %c0_161 = arith.constant 0 : index
    %318 = vector.load %arg1[%c1, %c0_160, %c0_161] : memref<2x2x32xf32, #tpu.memory_space<vmem>>, vector<1x2x32xf32>
    %319 = vector.shape_cast %318 : vector<1x2x32xf32> to vector<2x32xf32>
    %c0_162 = arith.constant 0 : index
    %c0_163 = arith.constant 0 : index
    %320 = vector.load %arg13[%c0_162, %c0_163] : memref<2x32xf32, #tpu.memory_space<vmem>>, vector<2x32xf32>
    tpu.vector_store %arg13[%c0_162, %c0_163], %319 {strides = array<i32>} : memref<2x32xf32, #tpu.memory_space<vmem>>, vector<2x32xf32>,
    %c1_164 = arith.constant 1 : index
    %c0_165 = arith.constant 0 : index
    %c0_166 = arith.constant 0 : index
    %321 = vector.load %arg2[%c1_164, %c0_165, %c0_166] : memref<2x2x32xf32, #tpu.memory_space<vmem>>, vector<1x2x32xf32>
    %322 = vector.shape_cast %321 : vector<1x2x32xf32> to vector<2x32xf32>
    %c0_167 = arith.constant 0 : index
    %c0_168 = arith.constant 0 : index
    %323 = vector.load %arg14[%c0_167, %c0_168] : memref<2x32xf32, #tpu.memory_space<vmem>>, vector<2x32xf32>
    tpu.vector_store %arg14[%c0_167, %c0_168], %322 {strides = array<i32>} : memref<2x32xf32, #tpu.memory_space<vmem>>, vector<2x32xf32>,
    %c0_i32_169 = arith.constant 0 : i32
    %c2_i32_170 = arith.constant 2 : i32
    %324 = arith.muli %c0_i32_169, %c2_i32_170 : i32
    %c0_171 = arith.constant 0 : index
    %c0_172 = arith.constant 0 : index
    %325 = vector.load %arg13[%c0_171, %c0_172] : memref<2x32xf32, #tpu.memory_space<vmem>>, vector<2x32xf32>
    %c0_173 = arith.constant 0 : index
    %c0_174 = arith.constant 0 : index
    %326 = vector.load %arg14[%c0_173, %c0_174] : memref<2x32xf32, #tpu.memory_space<vmem>>, vector<2x32xf32>
    %327 = arith.index_cast %324 : i32 to index
    %c0_175 = arith.constant 0 : index
    %328 = vector.load %arg12[%327, %c0_175] : memref<16x128xf32, #tpu.memory_space<vmem>>, vector<2x128xf32>
    %cst_176 = arith.constant dense<0.000000e+00> : vector<2x128xf32>
    %329 = tpu.matmul %325, %311, %cst_176 {dimension_numbers = #tpu.dot_dimension_numbers<[1], [0], [0], [1], [0, 0, 1, 1], [], []>} : vector<2x32xf32>, vector<32x128xf32>, vector<2x128xf32> -> vector<2x128xf32>
    %330 = arith.addf %328, %329 : vector<2x128xf32>
    %331 = vector.extract_strided_slice %330 {offsets = [0, 0], sizes = [2, 32], strides = [1, 1]} : vector<2x128xf32> to vector<2x32xf32>
    %332 = arith.negf %331 : vector<2x32xf32>
    %333 = math.exp %332 : vector<2x32xf32>
    %cst_177 = arith.constant 1.000000e+00 : f32
    %334 = vector.broadcast %cst_177 : f32 to vector<2x32xf32>
    %335 = arith.addf %334, %333 : vector<2x32xf32>
    %336 = arith.divf %334, %335 : vector<2x32xf32>
    %337 = vector.extract_strided_slice %330 {offsets = [0, 32], sizes = [2, 32], strides = [1, 1]} : vector<2x128xf32> to vector<2x32xf32>
    %338 = arith.negf %337 : vector<2x32xf32>
    %339 = math.exp %338 : vector<2x32xf32>
    %cst_178 = arith.constant 1.000000e+00 : f32
    %340 = vector.broadcast %cst_178 : f32 to vector<2x32xf32>
    %341 = arith.addf %340, %339 : vector<2x32xf32>
    %342 = arith.divf %340, %341 : vector<2x32xf32>
    %343 = vector.extract_strided_slice %330 {offsets = [0, 64], sizes = [2, 32], strides = [1, 1]} : vector<2x128xf32> to vector<2x32xf32>
    %344 = math.tanh %343 : vector<2x32xf32>
    %345 = vector.extract_strided_slice %330 {offsets = [0, 96], sizes = [2, 32], strides = [1, 1]} : vector<2x128xf32> to vector<2x32xf32>
    %346 = arith.negf %345 : vector<2x32xf32>
    %347 = math.exp %346 : vector<2x32xf32>
    %cst_179 = arith.constant 1.000000e+00 : f32
    %348 = vector.broadcast %cst_179 : f32 to vector<2x32xf32>
    %349 = arith.addf %348, %347 : vector<2x32xf32>
    %350 = arith.divf %348, %349 : vector<2x32xf32>
    %351 = arith.mulf %342, %326 : vector<2x32xf32>
    %352 = arith.mulf %336, %344 : vector<2x32xf32>
    %353 = arith.addf %351, %352 : vector<2x32xf32>
    %354 = math.tanh %353 : vector<2x32xf32>
    %355 = arith.mulf %350, %354 : vector<2x32xf32>
    %c0_180 = arith.constant 0 : index
    %c0_181 = arith.constant 0 : index
    %356 = vector.load %arg13[%c0_180, %c0_181] : memref<2x32xf32, #tpu.memory_space<vmem>>, vector<2x32xf32>
    tpu.vector_store %arg13[%c0_180, %c0_181], %355 {strides = array<i32>} : memref<2x32xf32, #tpu.memory_space<vmem>>, vector<2x32xf32>,
    %c0_182 = arith.constant 0 : index
    %c0_183 = arith.constant 0 : index
    %357 = vector.load %arg14[%c0_182, %c0_183] : memref<2x32xf32, #tpu.memory_space<vmem>>, vector<2x32xf32>
    tpu.vector_store %arg14[%c0_182, %c0_183], %353 {strides = array<i32>} : memref<2x32xf32, #tpu.memory_space<vmem>>, vector<2x32xf32>,
    %358 = arith.index_cast %324 : i32 to index
    %c0_184 = arith.constant 0 : index
    %359 = vector.load %arg9[%358, %c0_184] : memref<16x32xf32, #tpu.memory_space<vmem>>, vector<2x32xf32>
    tpu.vector_store %arg9[%358, %c0_184], %355 {strides = array<i32>} : memref<16x32xf32, #tpu.memory_space<vmem>>, vector<2x32xf32>,
    %c1_i32_185 = arith.constant 1 : i32
    %c2_i32_186 = arith.constant 2 : i32
    %360 = arith.muli %c1_i32_185, %c2_i32_186 : i32
    %c0_187 = arith.constant 0 : index
    %c0_188 = arith.constant 0 : index
    %361 = vector.load %arg13[%c0_187, %c0_188] : memref<2x32xf32, #tpu.memory_space<vmem>>, vector<2x32xf32>
    %c0_189 = arith.constant 0 : index
    %c0_190 = arith.constant 0 : index
    %362 = vector.load %arg14[%c0_189, %c0_190] : memref<2x32xf32, #tpu.memory_space<vmem>>, vector<2x32xf32>
    %363 = arith.index_cast %360 : i32 to index
    %c0_191 = arith.constant 0 : index
    %364 = vector.load %arg12[%363, %c0_191] : memref<16x128xf32, #tpu.memory_space<vmem>>, vector<2x128xf32>
    %cst_192 = arith.constant dense<0.000000e+00> : vector<2x128xf32>
    %365 = tpu.matmul %361, %311, %cst_192 {dimension_numbers = #tpu.dot_dimension_numbers<[1], [0], [0], [1], [0, 0, 1, 1], [], []>} : vector<2x32xf32>, vector<32x128xf32>, vector<2x128xf32> -> vector<2x128xf32>
    %366 = arith.addf %364, %365 : vector<2x128xf32>
    %367 = vector.extract_strided_slice %366 {offsets = [0, 0], sizes = [2, 32], strides = [1, 1]} : vector<2x128xf32> to vector<2x32xf32>
    %368 = arith.negf %367 : vector<2x32xf32>
    %369 = math.exp %368 : vector<2x32xf32>
    %cst_193 = arith.constant 1.000000e+00 : f32
    %370 = vector.broadcast %cst_193 : f32 to vector<2x32xf32>
    %371 = arith.addf %370, %369 : vector<2x32xf32>
    %372 = arith.divf %370, %371 : vector<2x32xf32>
    %373 = vector.extract_strided_slice %366 {offsets = [0, 32], sizes = [2, 32], strides = [1, 1]} : vector<2x128xf32> to vector<2x32xf32>
    %374 = arith.negf %373 : vector<2x32xf32>
    %375 = math.exp %374 : vector<2x32xf32>
    %cst_194 = arith.constant 1.000000e+00 : f32
    %376 = vector.broadcast %cst_194 : f32 to vector<2x32xf32>
    %377 = arith.addf %376, %375 : vector<2x32xf32>
    %378 = arith.divf %376, %377 : vector<2x32xf32>
    %379 = vector.extract_strided_slice %366 {offsets = [0, 64], sizes = [2, 32], strides = [1, 1]} : vector<2x128xf32> to vector<2x32xf32>
    %380 = math.tanh %379 : vector<2x32xf32>
    %381 = vector.extract_strided_slice %366 {offsets = [0, 96], sizes = [2, 32], strides = [1, 1]} : vector<2x128xf32> to vector<2x32xf32>
    %382 = arith.negf %381 : vector<2x32xf32>
    %383 = math.exp %382 : vector<2x32xf32>
    %cst_195 = arith.constant 1.000000e+00 : f32
    %384 = vector.broadcast %cst_195 : f32 to vector<2x32xf32>
    %385 = arith.addf %384, %383 : vector<2x32xf32>
    %386 = arith.divf %384, %385 : vector<2x32xf32>
    %387 = arith.mulf %378, %362 : vector<2x32xf32>
    %388 = arith.mulf %372, %380 : vector<2x32xf32>
    %389 = arith.addf %387, %388 : vector<2x32xf32>
    %390 = math.tanh %389 : vector<2x32xf32>
    %391 = arith.mulf %386, %390 : vector<2x32xf32>
    %c0_196 = arith.constant 0 : index
    %c0_197 = arith.constant 0 : index
    %392 = vector.load %arg13[%c0_196, %c0_197] : memref<2x32xf32, #tpu.memory_space<vmem>>, vector<2x32xf32>
    tpu.vector_store %arg13[%c0_196, %c0_197], %391 {strides = array<i32>} : memref<2x32xf32, #tpu.memory_space<vmem>>, vector<2x32xf32>,
    %c0_198 = arith.constant 0 : index
    %c0_199 = arith.constant 0 : index
    %393 = vector.load %arg14[%c0_198, %c0_199] : memref<2x32xf32, #tpu.memory_space<vmem>>, vector<2x32xf32>
    tpu.vector_store %arg14[%c0_198, %c0_199], %389 {strides = array<i32>} : memref<2x32xf32, #tpu.memory_space<vmem>>, vector<2x32xf32>,
    %394 = arith.index_cast %360 : i32 to index
    %c0_200 = arith.constant 0 : index
    %395 = vector.load %arg9[%394, %c0_200] : memref<16x32xf32, #tpu.memory_space<vmem>>, vector<2x32xf32>
    tpu.vector_store %arg9[%394, %c0_200], %391 {strides = array<i32>} : memref<16x32xf32, #tpu.memory_space<vmem>>, vector<2x32xf32>,
    %c2_i32_201 = arith.constant 2 : i32
    %c2_i32_202 = arith.constant 2 : i32
    %396 = arith.muli %c2_i32_201, %c2_i32_202 : i32
    %c0_203 = arith.constant 0 : index
    %c0_204 = arith.constant 0 : index
    %397 = vector.load %arg13[%c0_203, %c0_204] : memref<2x32xf32, #tpu.memory_space<vmem>>, vector<2x32xf32>
    %c0_205 = arith.constant 0 : index
    %c0_206 = arith.constant 0 : index
    %398 = vector.load %arg14[%c0_205, %c0_206] : memref<2x32xf32, #tpu.memory_space<vmem>>, vector<2x32xf32>
    %399 = arith.index_cast %396 : i32 to index
    %c0_207 = arith.constant 0 : index
    %400 = vector.load %arg12[%399, %c0_207] : memref<16x128xf32, #tpu.memory_space<vmem>>, vector<2x128xf32>
    %cst_208 = arith.constant dense<0.000000e+00> : vector<2x128xf32>
    %401 = tpu.matmul %397, %311, %cst_208 {dimension_numbers = #tpu.dot_dimension_numbers<[1], [0], [0], [1], [0, 0, 1, 1], [], []>} : vector<2x32xf32>, vector<32x128xf32>, vector<2x128xf32> -> vector<2x128xf32>
    %402 = arith.addf %400, %401 : vector<2x128xf32>
    %403 = vector.extract_strided_slice %402 {offsets = [0, 0], sizes = [2, 32], strides = [1, 1]} : vector<2x128xf32> to vector<2x32xf32>
    %404 = arith.negf %403 : vector<2x32xf32>
    %405 = math.exp %404 : vector<2x32xf32>
    %cst_209 = arith.constant 1.000000e+00 : f32
    %406 = vector.broadcast %cst_209 : f32 to vector<2x32xf32>
    %407 = arith.addf %406, %405 : vector<2x32xf32>
    %408 = arith.divf %406, %407 : vector<2x32xf32>
    %409 = vector.extract_strided_slice %402 {offsets = [0, 32], sizes = [2, 32], strides = [1, 1]} : vector<2x128xf32> to vector<2x32xf32>
    %410 = arith.negf %409 : vector<2x32xf32>
    %411 = math.exp %410 : vector<2x32xf32>
    %cst_210 = arith.constant 1.000000e+00 : f32
    %412 = vector.broadcast %cst_210 : f32 to vector<2x32xf32>
    %413 = arith.addf %412, %411 : vector<2x32xf32>
    %414 = arith.divf %412, %413 : vector<2x32xf32>
    %415 = vector.extract_strided_slice %402 {offsets = [0, 64], sizes = [2, 32], strides = [1, 1]} : vector<2x128xf32> to vector<2x32xf32>
    %416 = math.tanh %415 : vector<2x32xf32>
    %417 = vector.extract_strided_slice %402 {offsets = [0, 96], sizes = [2, 32], strides = [1, 1]} : vector<2x128xf32> to vector<2x32xf32>
    %418 = arith.negf %417 : vector<2x32xf32>
    %419 = math.exp %418 : vector<2x32xf32>
    %cst_211 = arith.constant 1.000000e+00 : f32
    %420 = vector.broadcast %cst_211 : f32 to vector<2x32xf32>
    %421 = arith.addf %420, %419 : vector<2x32xf32>
    %422 = arith.divf %420, %421 : vector<2x32xf32>
    %423 = arith.mulf %414, %398 : vector<2x32xf32>
    %424 = arith.mulf %408, %416 : vector<2x32xf32>
    %425 = arith.addf %423, %424 : vector<2x32xf32>
    %426 = math.tanh %425 : vector<2x32xf32>
    %427 = arith.mulf %422, %426 : vector<2x32xf32>
    %c0_212 = arith.constant 0 : index
    %c0_213 = arith.constant 0 : index
    %428 = vector.load %arg13[%c0_212, %c0_213] : memref<2x32xf32, #tpu.memory_space<vmem>>, vector<2x32xf32>
    tpu.vector_store %arg13[%c0_212, %c0_213], %427 {strides = array<i32>} : memref<2x32xf32, #tpu.memory_space<vmem>>, vector<2x32xf32>,
    %c0_214 = arith.constant 0 : index
    %c0_215 = arith.constant 0 : index
    %429 = vector.load %arg14[%c0_214, %c0_215] : memref<2x32xf32, #tpu.memory_space<vmem>>, vector<2x32xf32>
    tpu.vector_store %arg14[%c0_214, %c0_215], %425 {strides = array<i32>} : memref<2x32xf32, #tpu.memory_space<vmem>>, vector<2x32xf32>,
    %430 = arith.index_cast %396 : i32 to index
    %c0_216 = arith.constant 0 : index
    %431 = vector.load %arg9[%430, %c0_216] : memref<16x32xf32, #tpu.memory_space<vmem>>, vector<2x32xf32>
    tpu.vector_store %arg9[%430, %c0_216], %427 {strides = array<i32>} : memref<16x32xf32, #tpu.memory_space<vmem>>, vector<2x32xf32>,
    %c3_i32_217 = arith.constant 3 : i32
    %c2_i32_218 = arith.constant 2 : i32
    %432 = arith.muli %c3_i32_217, %c2_i32_218 : i32
    %c0_219 = arith.constant 0 : index
    %c0_220 = arith.constant 0 : index
    %433 = vector.load %arg13[%c0_219, %c0_220] : memref<2x32xf32, #tpu.memory_space<vmem>>, vector<2x32xf32>
    %c0_221 = arith.constant 0 : index
    %c0_222 = arith.constant 0 : index
    %434 = vector.load %arg14[%c0_221, %c0_222] : memref<2x32xf32, #tpu.memory_space<vmem>>, vector<2x32xf32>
    %435 = arith.index_cast %432 : i32 to index
    %c0_223 = arith.constant 0 : index
    %436 = vector.load %arg12[%435, %c0_223] : memref<16x128xf32, #tpu.memory_space<vmem>>, vector<2x128xf32>
    %cst_224 = arith.constant dense<0.000000e+00> : vector<2x128xf32>
    %437 = tpu.matmul %433, %311, %cst_224 {dimension_numbers = #tpu.dot_dimension_numbers<[1], [0], [0], [1], [0, 0, 1, 1], [], []>} : vector<2x32xf32>, vector<32x128xf32>, vector<2x128xf32> -> vector<2x128xf32>
    %438 = arith.addf %436, %437 : vector<2x128xf32>
    %439 = vector.extract_strided_slice %438 {offsets = [0, 0], sizes = [2, 32], strides = [1, 1]} : vector<2x128xf32> to vector<2x32xf32>
    %440 = arith.negf %439 : vector<2x32xf32>
    %441 = math.exp %440 : vector<2x32xf32>
    %cst_225 = arith.constant 1.000000e+00 : f32
    %442 = vector.broadcast %cst_225 : f32 to vector<2x32xf32>
    %443 = arith.addf %442, %441 : vector<2x32xf32>
    %444 = arith.divf %442, %443 : vector<2x32xf32>
    %445 = vector.extract_strided_slice %438 {offsets = [0, 32], sizes = [2, 32], strides = [1, 1]} : vector<2x128xf32> to vector<2x32xf32>
    %446 = arith.negf %445 : vector<2x32xf32>
    %447 = math.exp %446 : vector<2x32xf32>
    %cst_226 = arith.constant 1.000000e+00 : f32
    %448 = vector.broadcast %cst_226 : f32 to vector<2x32xf32>
    %449 = arith.addf %448, %447 : vector<2x32xf32>
    %450 = arith.divf %448, %449 : vector<2x32xf32>
    %451 = vector.extract_strided_slice %438 {offsets = [0, 64], sizes = [2, 32], strides = [1, 1]} : vector<2x128xf32> to vector<2x32xf32>
    %452 = math.tanh %451 : vector<2x32xf32>
    %453 = vector.extract_strided_slice %438 {offsets = [0, 96], sizes = [2, 32], strides = [1, 1]} : vector<2x128xf32> to vector<2x32xf32>
    %454 = arith.negf %453 : vector<2x32xf32>
    %455 = math.exp %454 : vector<2x32xf32>
    %cst_227 = arith.constant 1.000000e+00 : f32
    %456 = vector.broadcast %cst_227 : f32 to vector<2x32xf32>
    %457 = arith.addf %456, %455 : vector<2x32xf32>
    %458 = arith.divf %456, %457 : vector<2x32xf32>
    %459 = arith.mulf %450, %434 : vector<2x32xf32>
    %460 = arith.mulf %444, %452 : vector<2x32xf32>
    %461 = arith.addf %459, %460 : vector<2x32xf32>
    %462 = math.tanh %461 : vector<2x32xf32>
    %463 = arith.mulf %458, %462 : vector<2x32xf32>
    %c0_228 = arith.constant 0 : index
    %c0_229 = arith.constant 0 : index
    %464 = vector.load %arg13[%c0_228, %c0_229] : memref<2x32xf32, #tpu.memory_space<vmem>>, vector<2x32xf32>
    tpu.vector_store %arg13[%c0_228, %c0_229], %463 {strides = array<i32>} : memref<2x32xf32, #tpu.memory_space<vmem>>, vector<2x32xf32>,
    %c0_230 = arith.constant 0 : index
    %c0_231 = arith.constant 0 : index
    %465 = vector.load %arg14[%c0_230, %c0_231] : memref<2x32xf32, #tpu.memory_space<vmem>>, vector<2x32xf32>
    tpu.vector_store %arg14[%c0_230, %c0_231], %461 {strides = array<i32>} : memref<2x32xf32, #tpu.memory_space<vmem>>, vector<2x32xf32>,
    %466 = arith.index_cast %432 : i32 to index
    %c0_232 = arith.constant 0 : index
    %467 = vector.load %arg9[%466, %c0_232] : memref<16x32xf32, #tpu.memory_space<vmem>>, vector<2x32xf32>
    tpu.vector_store %arg9[%466, %c0_232], %463 {strides = array<i32>} : memref<16x32xf32, #tpu.memory_space<vmem>>, vector<2x32xf32>,
    %c4_i32_233 = arith.constant 4 : i32
    %c2_i32_234 = arith.constant 2 : i32
    %468 = arith.muli %c4_i32_233, %c2_i32_234 : i32
    %c0_235 = arith.constant 0 : index
    %c0_236 = arith.constant 0 : index
    %469 = vector.load %arg13[%c0_235, %c0_236] : memref<2x32xf32, #tpu.memory_space<vmem>>, vector<2x32xf32>
    %c0_237 = arith.constant 0 : index
    %c0_238 = arith.constant 0 : index
    %470 = vector.load %arg14[%c0_237, %c0_238] : memref<2x32xf32, #tpu.memory_space<vmem>>, vector<2x32xf32>
    %471 = arith.index_cast %468 : i32 to index
    %c0_239 = arith.constant 0 : index
    %472 = vector.load %arg12[%471, %c0_239] : memref<16x128xf32, #tpu.memory_space<vmem>>, vector<2x128xf32>
    %cst_240 = arith.constant dense<0.000000e+00> : vector<2x128xf32>
    %473 = tpu.matmul %469, %311, %cst_240 {dimension_numbers = #tpu.dot_dimension_numbers<[1], [0], [0], [1], [0, 0, 1, 1], [], []>} : vector<2x32xf32>, vector<32x128xf32>, vector<2x128xf32> -> vector<2x128xf32>
    %474 = arith.addf %472, %473 : vector<2x128xf32>
    %475 = vector.extract_strided_slice %474 {offsets = [0, 0], sizes = [2, 32], strides = [1, 1]} : vector<2x128xf32> to vector<2x32xf32>
    %476 = arith.negf %475 : vector<2x32xf32>
    %477 = math.exp %476 : vector<2x32xf32>
    %cst_241 = arith.constant 1.000000e+00 : f32
    %478 = vector.broadcast %cst_241 : f32 to vector<2x32xf32>
    %479 = arith.addf %478, %477 : vector<2x32xf32>
    %480 = arith.divf %478, %479 : vector<2x32xf32>
    %481 = vector.extract_strided_slice %474 {offsets = [0, 32], sizes = [2, 32], strides = [1, 1]} : vector<2x128xf32> to vector<2x32xf32>
    %482 = arith.negf %481 : vector<2x32xf32>
    %483 = math.exp %482 : vector<2x32xf32>
    %cst_242 = arith.constant 1.000000e+00 : f32
    %484 = vector.broadcast %cst_242 : f32 to vector<2x32xf32>
    %485 = arith.addf %484, %483 : vector<2x32xf32>
    %486 = arith.divf %484, %485 : vector<2x32xf32>
    %487 = vector.extract_strided_slice %474 {offsets = [0, 64], sizes = [2, 32], strides = [1, 1]} : vector<2x128xf32> to vector<2x32xf32>
    %488 = math.tanh %487 : vector<2x32xf32>
    %489 = vector.extract_strided_slice %474 {offsets = [0, 96], sizes = [2, 32], strides = [1, 1]} : vector<2x128xf32> to vector<2x32xf32>
    %490 = arith.negf %489 : vector<2x32xf32>
    %491 = math.exp %490 : vector<2x32xf32>
    %cst_243 = arith.constant 1.000000e+00 : f32
    %492 = vector.broadcast %cst_243 : f32 to vector<2x32xf32>
    %493 = arith.addf %492, %491 : vector<2x32xf32>
    %494 = arith.divf %492, %493 : vector<2x32xf32>
    %495 = arith.mulf %486, %470 : vector<2x32xf32>
    %496 = arith.mulf %480, %488 : vector<2x32xf32>
    %497 = arith.addf %495, %496 : vector<2x32xf32>
    %498 = math.tanh %497 : vector<2x32xf32>
    %499 = arith.mulf %494, %498 : vector<2x32xf32>
    %c0_244 = arith.constant 0 : index
    %c0_245 = arith.constant 0 : index
    %500 = vector.load %arg13[%c0_244, %c0_245] : memref<2x32xf32, #tpu.memory_space<vmem>>, vector<2x32xf32>
    tpu.vector_store %arg13[%c0_244, %c0_245], %499 {strides = array<i32>} : memref<2x32xf32, #tpu.memory_space<vmem>>, vector<2x32xf32>,
    %c0_246 = arith.constant 0 : index
    %c0_247 = arith.constant 0 : index
    %501 = vector.load %arg14[%c0_246, %c0_247] : memref<2x32xf32, #tpu.memory_space<vmem>>, vector<2x32xf32>
    tpu.vector_store %arg14[%c0_246, %c0_247], %497 {strides = array<i32>} : memref<2x32xf32, #tpu.memory_space<vmem>>, vector<2x32xf32>,
    %502 = arith.index_cast %468 : i32 to index
    %c0_248 = arith.constant 0 : index
    %503 = vector.load %arg9[%502, %c0_248] : memref<16x32xf32, #tpu.memory_space<vmem>>, vector<2x32xf32>
    tpu.vector_store %arg9[%502, %c0_248], %499 {strides = array<i32>} : memref<16x32xf32, #tpu.memory_space<vmem>>, vector<2x32xf32>,
    %c5_i32_249 = arith.constant 5 : i32
    %c2_i32_250 = arith.constant 2 : i32
    %504 = arith.muli %c5_i32_249, %c2_i32_250 : i32
    %c0_251 = arith.constant 0 : index
    %c0_252 = arith.constant 0 : index
    %505 = vector.load %arg13[%c0_251, %c0_252] : memref<2x32xf32, #tpu.memory_space<vmem>>, vector<2x32xf32>
    %c0_253 = arith.constant 0 : index
    %c0_254 = arith.constant 0 : index
    %506 = vector.load %arg14[%c0_253, %c0_254] : memref<2x32xf32, #tpu.memory_space<vmem>>, vector<2x32xf32>
    %507 = arith.index_cast %504 : i32 to index
    %c0_255 = arith.constant 0 : index
    %508 = vector.load %arg12[%507, %c0_255] : memref<16x128xf32, #tpu.memory_space<vmem>>, vector<2x128xf32>
    %cst_256 = arith.constant dense<0.000000e+00> : vector<2x128xf32>
    %509 = tpu.matmul %505, %311, %cst_256 {dimension_numbers = #tpu.dot_dimension_numbers<[1], [0], [0], [1], [0, 0, 1, 1], [], []>} : vector<2x32xf32>, vector<32x128xf32>, vector<2x128xf32> -> vector<2x128xf32>
    %510 = arith.addf %508, %509 : vector<2x128xf32>
    %511 = vector.extract_strided_slice %510 {offsets = [0, 0], sizes = [2, 32], strides = [1, 1]} : vector<2x128xf32> to vector<2x32xf32>
    %512 = arith.negf %511 : vector<2x32xf32>
    %513 = math.exp %512 : vector<2x32xf32>
    %cst_257 = arith.constant 1.000000e+00 : f32
    %514 = vector.broadcast %cst_257 : f32 to vector<2x32xf32>
    %515 = arith.addf %514, %513 : vector<2x32xf32>
    %516 = arith.divf %514, %515 : vector<2x32xf32>
    %517 = vector.extract_strided_slice %510 {offsets = [0, 32], sizes = [2, 32], strides = [1, 1]} : vector<2x128xf32> to vector<2x32xf32>
    %518 = arith.negf %517 : vector<2x32xf32>
    %519 = math.exp %518 : vector<2x32xf32>
    %cst_258 = arith.constant 1.000000e+00 : f32
    %520 = vector.broadcast %cst_258 : f32 to vector<2x32xf32>
    %521 = arith.addf %520, %519 : vector<2x32xf32>
    %522 = arith.divf %520, %521 : vector<2x32xf32>
    %523 = vector.extract_strided_slice %510 {offsets = [0, 64], sizes = [2, 32], strides = [1, 1]} : vector<2x128xf32> to vector<2x32xf32>
    %524 = math.tanh %523 : vector<2x32xf32>
    %525 = vector.extract_strided_slice %510 {offsets = [0, 96], sizes = [2, 32], strides = [1, 1]} : vector<2x128xf32> to vector<2x32xf32>
    %526 = arith.negf %525 : vector<2x32xf32>
    %527 = math.exp %526 : vector<2x32xf32>
    %cst_259 = arith.constant 1.000000e+00 : f32
    %528 = vector.broadcast %cst_259 : f32 to vector<2x32xf32>
    %529 = arith.addf %528, %527 : vector<2x32xf32>
    %530 = arith.divf %528, %529 : vector<2x32xf32>
    %531 = arith.mulf %522, %506 : vector<2x32xf32>
    %532 = arith.mulf %516, %524 : vector<2x32xf32>
    %533 = arith.addf %531, %532 : vector<2x32xf32>
    %534 = math.tanh %533 : vector<2x32xf32>
    %535 = arith.mulf %530, %534 : vector<2x32xf32>
    %c0_260 = arith.constant 0 : index
    %c0_261 = arith.constant 0 : index
    %536 = vector.load %arg13[%c0_260, %c0_261] : memref<2x32xf32, #tpu.memory_space<vmem>>, vector<2x32xf32>
    tpu.vector_store %arg13[%c0_260, %c0_261], %535 {strides = array<i32>} : memref<2x32xf32, #tpu.memory_space<vmem>>, vector<2x32xf32>,
    %c0_262 = arith.constant 0 : index
    %c0_263 = arith.constant 0 : index
    %537 = vector.load %arg14[%c0_262, %c0_263] : memref<2x32xf32, #tpu.memory_space<vmem>>, vector<2x32xf32>
    tpu.vector_store %arg14[%c0_262, %c0_263], %533 {strides = array<i32>} : memref<2x32xf32, #tpu.memory_space<vmem>>, vector<2x32xf32>,
    %538 = arith.index_cast %504 : i32 to index
    %c0_264 = arith.constant 0 : index
    %539 = vector.load %arg9[%538, %c0_264] : memref<16x32xf32, #tpu.memory_space<vmem>>, vector<2x32xf32>
    tpu.vector_store %arg9[%538, %c0_264], %535 {strides = array<i32>} : memref<16x32xf32, #tpu.memory_space<vmem>>, vector<2x32xf32>,
    %c6_i32_265 = arith.constant 6 : i32
    %c2_i32_266 = arith.constant 2 : i32
    %540 = arith.muli %c6_i32_265, %c2_i32_266 : i32
    %c0_267 = arith.constant 0 : index
    %c0_268 = arith.constant 0 : index
    %541 = vector.load %arg13[%c0_267, %c0_268] : memref<2x32xf32, #tpu.memory_space<vmem>>, vector<2x32xf32>
    %c0_269 = arith.constant 0 : index
    %c0_270 = arith.constant 0 : index
    %542 = vector.load %arg14[%c0_269, %c0_270] : memref<2x32xf32, #tpu.memory_space<vmem>>, vector<2x32xf32>
    %543 = arith.index_cast %540 : i32 to index
    %c0_271 = arith.constant 0 : index
    %544 = vector.load %arg12[%543, %c0_271] : memref<16x128xf32, #tpu.memory_space<vmem>>, vector<2x128xf32>
    %cst_272 = arith.constant dense<0.000000e+00> : vector<2x128xf32>
    %545 = tpu.matmul %541, %311, %cst_272 {dimension_numbers = #tpu.dot_dimension_numbers<[1], [0], [0], [1], [0, 0, 1, 1], [], []>} : vector<2x32xf32>, vector<32x128xf32>, vector<2x128xf32> -> vector<2x128xf32>
    %546 = arith.addf %544, %545 : vector<2x128xf32>
    %547 = vector.extract_strided_slice %546 {offsets = [0, 0], sizes = [2, 32], strides = [1, 1]} : vector<2x128xf32> to vector<2x32xf32>
    %548 = arith.negf %547 : vector<2x32xf32>
    %549 = math.exp %548 : vector<2x32xf32>
    %cst_273 = arith.constant 1.000000e+00 : f32
    %550 = vector.broadcast %cst_273 : f32 to vector<2x32xf32>
    %551 = arith.addf %550, %549 : vector<2x32xf32>
    %552 = arith.divf %550, %551 : vector<2x32xf32>
    %553 = vector.extract_strided_slice %546 {offsets = [0, 32], sizes = [2, 32], strides = [1, 1]} : vector<2x128xf32> to vector<2x32xf32>
    %554 = arith.negf %553 : vector<2x32xf32>
    %555 = math.exp %554 : vector<2x32xf32>
    %cst_274 = arith.constant 1.000000e+00 : f32
    %556 = vector.broadcast %cst_274 : f32 to vector<2x32xf32>
    %557 = arith.addf %556, %555 : vector<2x32xf32>
    %558 = arith.divf %556, %557 : vector<2x32xf32>
    %559 = vector.extract_strided_slice %546 {offsets = [0, 64], sizes = [2, 32], strides = [1, 1]} : vector<2x128xf32> to vector<2x32xf32>
    %560 = math.tanh %559 : vector<2x32xf32>
    %561 = vector.extract_strided_slice %546 {offsets = [0, 96], sizes = [2, 32], strides = [1, 1]} : vector<2x128xf32> to vector<2x32xf32>
    %562 = arith.negf %561 : vector<2x32xf32>
    %563 = math.exp %562 : vector<2x32xf32>
    %cst_275 = arith.constant 1.000000e+00 : f32
    %564 = vector.broadcast %cst_275 : f32 to vector<2x32xf32>
    %565 = arith.addf %564, %563 : vector<2x32xf32>
    %566 = arith.divf %564, %565 : vector<2x32xf32>
    %567 = arith.mulf %558, %542 : vector<2x32xf32>
    %568 = arith.mulf %552, %560 : vector<2x32xf32>
    %569 = arith.addf %567, %568 : vector<2x32xf32>
    %570 = math.tanh %569 : vector<2x32xf32>
    %571 = arith.mulf %566, %570 : vector<2x32xf32>
    %c0_276 = arith.constant 0 : index
    %c0_277 = arith.constant 0 : index
    %572 = vector.load %arg13[%c0_276, %c0_277] : memref<2x32xf32, #tpu.memory_space<vmem>>, vector<2x32xf32>
    tpu.vector_store %arg13[%c0_276, %c0_277], %571 {strides = array<i32>} : memref<2x32xf32, #tpu.memory_space<vmem>>, vector<2x32xf32>,
    %c0_278 = arith.constant 0 : index
    %c0_279 = arith.constant 0 : index
    %573 = vector.load %arg14[%c0_278, %c0_279] : memref<2x32xf32, #tpu.memory_space<vmem>>, vector<2x32xf32>
    tpu.vector_store %arg14[%c0_278, %c0_279], %569 {strides = array<i32>} : memref<2x32xf32, #tpu.memory_space<vmem>>, vector<2x32xf32>,
    %574 = arith.index_cast %540 : i32 to index
    %c0_280 = arith.constant 0 : index
    %575 = vector.load %arg9[%574, %c0_280] : memref<16x32xf32, #tpu.memory_space<vmem>>, vector<2x32xf32>
    tpu.vector_store %arg9[%574, %c0_280], %571 {strides = array<i32>} : memref<16x32xf32, #tpu.memory_space<vmem>>, vector<2x32xf32>,
    %c7_i32_281 = arith.constant 7 : i32
    %c2_i32_282 = arith.constant 2 : i32
    %576 = arith.muli %c7_i32_281, %c2_i32_282 : i32
    %c0_283 = arith.constant 0 : index
    %c0_284 = arith.constant 0 : index
    %577 = vector.load %arg13[%c0_283, %c0_284] : memref<2x32xf32, #tpu.memory_space<vmem>>, vector<2x32xf32>
    %c0_285 = arith.constant 0 : index
    %c0_286 = arith.constant 0 : index
    %578 = vector.load %arg14[%c0_285, %c0_286] : memref<2x32xf32, #tpu.memory_space<vmem>>, vector<2x32xf32>
    %579 = arith.index_cast %576 : i32 to index
    %c0_287 = arith.constant 0 : index
    %580 = vector.load %arg12[%579, %c0_287] : memref<16x128xf32, #tpu.memory_space<vmem>>, vector<2x128xf32>
    %cst_288 = arith.constant dense<0.000000e+00> : vector<2x128xf32>
    %581 = tpu.matmul %577, %311, %cst_288 {dimension_numbers = #tpu.dot_dimension_numbers<[1], [0], [0], [1], [0, 0, 1, 1], [], []>} : vector<2x32xf32>, vector<32x128xf32>, vector<2x128xf32> -> vector<2x128xf32>
    %582 = arith.addf %580, %581 : vector<2x128xf32>
    %583 = vector.extract_strided_slice %582 {offsets = [0, 0], sizes = [2, 32], strides = [1, 1]} : vector<2x128xf32> to vector<2x32xf32>
    %584 = arith.negf %583 : vector<2x32xf32>
    %585 = math.exp %584 : vector<2x32xf32>
    %cst_289 = arith.constant 1.000000e+00 : f32
    %586 = vector.broadcast %cst_289 : f32 to vector<2x32xf32>
    %587 = arith.addf %586, %585 : vector<2x32xf32>
    %588 = arith.divf %586, %587 : vector<2x32xf32>
    %589 = vector.extract_strided_slice %582 {offsets = [0, 32], sizes = [2, 32], strides = [1, 1]} : vector<2x128xf32> to vector<2x32xf32>
    %590 = arith.negf %589 : vector<2x32xf32>
    %591 = math.exp %590 : vector<2x32xf32>
    %cst_290 = arith.constant 1.000000e+00 : f32
    %592 = vector.broadcast %cst_290 : f32 to vector<2x32xf32>
    %593 = arith.addf %592, %591 : vector<2x32xf32>
    %594 = arith.divf %592, %593 : vector<2x32xf32>
    %595 = vector.extract_strided_slice %582 {offsets = [0, 64], sizes = [2, 32], strides = [1, 1]} : vector<2x128xf32> to vector<2x32xf32>
    %596 = math.tanh %595 : vector<2x32xf32>
    %597 = vector.extract_strided_slice %582 {offsets = [0, 96], sizes = [2, 32], strides = [1, 1]} : vector<2x128xf32> to vector<2x32xf32>
    %598 = arith.negf %597 : vector<2x32xf32>
    %599 = math.exp %598 : vector<2x32xf32>
    %cst_291 = arith.constant 1.000000e+00 : f32
    %600 = vector.broadcast %cst_291 : f32 to vector<2x32xf32>
    %601 = arith.addf %600, %599 : vector<2x32xf32>
    %602 = arith.divf %600, %601 : vector<2x32xf32>
    %603 = arith.mulf %594, %578 : vector<2x32xf32>
    %604 = arith.mulf %588, %596 : vector<2x32xf32>
    %605 = arith.addf %603, %604 : vector<2x32xf32>
    %606 = math.tanh %605 : vector<2x32xf32>
    %607 = arith.mulf %602, %606 : vector<2x32xf32>
    %c0_292 = arith.constant 0 : index
    %c0_293 = arith.constant 0 : index
    %608 = vector.load %arg13[%c0_292, %c0_293] : memref<2x32xf32, #tpu.memory_space<vmem>>, vector<2x32xf32>
    tpu.vector_store %arg13[%c0_292, %c0_293], %607 {strides = array<i32>} : memref<2x32xf32, #tpu.memory_space<vmem>>, vector<2x32xf32>,
    %c0_294 = arith.constant 0 : index
    %c0_295 = arith.constant 0 : index
    %609 = vector.load %arg14[%c0_294, %c0_295] : memref<2x32xf32, #tpu.memory_space<vmem>>, vector<2x32xf32>
    tpu.vector_store %arg14[%c0_294, %c0_295], %605 {strides = array<i32>} : memref<2x32xf32, #tpu.memory_space<vmem>>, vector<2x32xf32>,
    %610 = arith.index_cast %576 : i32 to index
    %c0_296 = arith.constant 0 : index
    %611 = vector.load %arg9[%610, %c0_296] : memref<16x32xf32, #tpu.memory_space<vmem>>, vector<2x32xf32>
    tpu.vector_store %arg9[%610, %c0_296], %607 {strides = array<i32>} : memref<16x32xf32, #tpu.memory_space<vmem>>, vector<2x32xf32>,
    %c8_i32_297 = arith.constant 8 : i32
    %c0_298 = arith.constant 0 : index
    %c0_299 = arith.constant 0 : index
    %612 = vector.load %arg13[%c0_298, %c0_299] : memref<2x32xf32, #tpu.memory_space<vmem>>, vector<2x32xf32>
    %c1_300 = arith.constant 1 : index
    %c0_301 = arith.constant 0 : index
    %c0_302 = arith.constant 0 : index
    %613 = vector.load %arg10[%c1_300, %c0_301, %c0_302] : memref<2x2x32xf32, #tpu.memory_space<vmem>>, vector<1x2x32xf32>
    %614 = vector.shape_cast %613 : vector<1x2x32xf32> to vector<2x32xf32>
    %615 = vector.shape_cast %612 : vector<2x32xf32> to vector<1x2x32xf32>
    tpu.vector_store %arg10[%c1_300, %c0_301, %c0_302], %615 {strides = array<i32>} : memref<2x2x32xf32, #tpu.memory_space<vmem>>, vector<1x2x32xf32>,
    %c0_303 = arith.constant 0 : index
    %c0_304 = arith.constant 0 : index
    %616 = vector.load %arg14[%c0_303, %c0_304] : memref<2x32xf32, #tpu.memory_space<vmem>>, vector<2x32xf32>
    %c1_305 = arith.constant 1 : index
    %c0_306 = arith.constant 0 : index
    %c0_307 = arith.constant 0 : index
    %617 = vector.load %arg11[%c1_305, %c0_306, %c0_307] : memref<2x2x32xf32, #tpu.memory_space<vmem>>, vector<1x2x32xf32>
    %618 = vector.shape_cast %617 : vector<1x2x32xf32> to vector<2x32xf32>
    %619 = vector.shape_cast %616 : vector<2x32xf32> to vector<1x2x32xf32>
    tpu.vector_store %arg11[%c1_305, %c0_306, %c0_307], %619 {strides = array<i32>} : memref<2x2x32xf32, #tpu.memory_space<vmem>>, vector<1x2x32xf32>,
    return
  }
}

</mosaic_0001>

<llo_original>
// kernel: core_forward.1
$region0: #{core_forward.1}
  #allocation0 [shape = 'u32[]', space=smem, size = 0x4, offset = 0x4, fixed_abs, tag = 'smem constant byte address 0x4 - core index']
  #allocation1 [shape = 'u32[72,128]{1,0:T(1,128)}', space=vmem, size = 0x9000, scoped, tag = 'internal scratch']
  #allocation2 [shape = 'f32[16,128]{1,0:T(8,128)}', space=vmem, size = 0x2000, scoped, tag = 'scratch operand']
  #allocation3 [shape = 'f32[2,32]{1,0:T(2,128)}', space=vmem, size = 0x400, scoped, tag = 'scratch operand']
  #allocation4 [shape = 'f32[2,32]{1,0:T(2,128)}', space=vmem, size = 0x400, scoped, tag = 'scratch operand']
  %s0 = inlined_call_operand.vmem [shape: f32[16,32], index: 0, kind: input, shape index: {}]
  %s1 = inlined_call_operand.vmem [shape: f32[2,2,32], index: 1, kind: input, shape index: {}, may-alias: {1,2}]
  %s2 = inlined_call_operand.vmem [shape: f32[2,2,32], index: 2, kind: input, shape index: {}, may-alias: {1,2}]
  %s3 = inlined_call_operand.vmem [shape: f32[32,128], index: 3, kind: input, shape index: {}]
  %s4 = inlined_call_operand.vmem [shape: f32[32,128], index: 4, kind: input, shape index: {}]
  %s5 = inlined_call_operand.vmem [shape: f32[1,128], index: 5, kind: input, shape index: {}]
  %s6 = inlined_call_operand.hbm [shape: f32[32,128], index: 6, kind: input, shape index: {}]
  %s7 = inlined_call_operand.hbm [shape: f32[32,128], index: 7, kind: input, shape index: {}]
  %s8 = inlined_call_operand.vmem [shape: f32[1,128], index: 8, kind: input, shape index: {}]
  %s9 = inlined_call_operand.vmem [shape: f32[16,32], index: 9, kind: output, shape index: {0}]
  %s10 = inlined_call_operand.hbm [shape: f32[2,2,32], index: 10, kind: output, shape index: {1}]
  %s11 = inlined_call_operand.hbm [shape: f32[2,2,32], index: 11, kind: output, shape index: {2}]
  %12 = xla_tuple %s9, %s10, %s11
  %s13 = sld [smem:[#allocation0]]
  $region70: #{core_forward.1} parent=0
    _
  %s15 = ssub.s32 1, %s13
  %s16 = scalar_select 0, %s15, %s13
  $region1: #{core_forward.1} parent=0
    #allocation5 [shape = 'u8[16384]{0}', space=vmem, size = 0x4000, scoped, tag = 'input window, operand 6, single buffered']
    #allocation6 [shape = 's32[1]{0}', space=sflag, size = 0x4, scoped, tag = 'scoped memory for core_forward.1']
    #allocation7 [shape = 's32[1]{0}', space=sflag, size = 0x4, scoped, tag = 'scoped memory for core_forward.1']
    #allocation8 [shape = 'u8[16384]{0}', space=vmem, size = 0x4000, scoped, tag = 'input window, operand 7, single buffered']
    #allocation9 [shape = 's32[1]{0}', space=sflag, size = 0x4, scoped, tag = 'scoped memory for core_forward.1']
    #allocation10 [shape = 'u8[2048]{0}', space=vmem, size = 0x800, scoped, tag = 'output window, operand 1, single buffered']
    #allocation11 [shape = 'u8[2048]{0}', space=vmem, size = 0x800, scoped, tag = 'output window, operand 2, single buffered']
    #allocation12 [shape = 's32[1]{0}', space=sflag, size = 0x4, scoped, tag = 'scoped memory for core_forward.1']
    %17 = vsyncpa [#allocation6], 0
    %18 = vsyncpa [#allocation9], 0
    %19 = vsyncpa [#allocation7], 0
    %20 = vsyncpa [#allocation12], 0
    // Predicated region
    $region2: #{core_forward.1} parent=1 // pred_check
      _
    $region3: #{core_forward.1} parent=1 // pred_check_branch
      %22 = sbr.rel (0) target = $region5
    $region4: #{core_forward.1} parent=1 // pred_region
      _
    $region5: #{core_forward.1} parent=1 // pred_fallthru
      _
    // Predicated region
    $region6: #{core_forward.1} parent=1 // pred_check
      _
    $region7: #{core_forward.1} parent=1 // pred_check_branch
      %24 = sbr.rel (0) target = $region9
    $region8: #{core_forward.1} parent=1 // pred_region
      _
    $region9: #{core_forward.1} parent=1 // pred_fallthru
      _
    // Predicated region
    $region10: #{core_forward.1} parent=1 // pred_check
      _
    $region11: #{core_forward.1} parent=1 // pred_check_branch
      %26 = sbr.rel (0) target = $region13
    $region12: #{core_forward.1} parent=1 // pred_region
      _
    $region13: #{core_forward.1} parent=1 // pred_fallthru
      _
    // Predicated region
    $region14: #{core_forward.1} parent=1 // pred_check
      _
    $region15: #{core_forward.1} parent=1 // pred_check_branch
      %28 = sbr.rel (0) target = $region17
    $region16: #{core_forward.1} parent=1 // pred_region
      _
    $region17: #{core_forward.1} parent=1 // pred_fallthru
      _
    // Predicated region
    $region18: #{core_forward.1} parent=1 // pred_check
      _
    $region19: #{core_forward.1} parent=1 // pred_check_branch
      %30 = sbr.rel (0) target = $region21
    $region20: #{core_forward.1} parent=1 // pred_region
      _
    $region21: #{core_forward.1} parent=1 // pred_fallthru
      _
    // Predicated region
    $region22: #{core_forward.1} parent=1 // pred_check
      _
    $region23: #{core_forward.1} parent=1 // pred_check_branch
      %32 = sbr.rel (0) target = $region25
    $region24: #{core_forward.1} parent=1 // pred_region
      _
    $region25: #{core_forward.1} parent=1 // pred_fallthru
      _
    // Predicated region
    $region26: #{core_forward.1} parent=1 // pred_check
      _
    $region27: #{core_forward.1} parent=1 // pred_check_branch
      %34 = sbr.rel (0) target = $region29
    $region28: #{core_forward.1} parent=1 // pred_region
      %36 = vsyncadd [#allocation6], 0
      %s37 = sshll.u32 %s6, 4
      %s38 = int_to_ptr.hbm [resolvable:$true] %s37
      %s39 = sshll.u32 [#allocation5], 4
      %s40 = int_to_ptr.vmem [resolvable:$true] %s39
      %45 = dma.hbm_to_vmem [thread:$0]  %s38, 512, %s40, [#allocation6], 128, 128, 8
    $region29: #{core_forward.1} parent=1 // pred_fallthru
      _
    // Predicated region
    $region30: #{core_forward.1} parent=1 // pred_check
      _
    $region31: #{core_forward.1} parent=1 // pred_check_branch
      %47 = sbr.rel (0) target = $region33
    $region32: #{core_forward.1} parent=1 // pred_region
      %49 = vsyncadd [#allocation9], 0
      %s50 = sshll.u32 %s7, 4
      %s51 = int_to_ptr.hbm [resolvable:$true] %s50
      %s52 = sshll.u32 [#allocation8], 4
      %s53 = int_to_ptr.vmem [resolvable:$true] %s52
      %58 = dma.hbm_to_vmem [thread:$0]  %s51, 512, %s53, [#allocation9], 128, 128, 8
    $region33: #{core_forward.1} parent=1 // pred_fallthru
      _
    // Predicated region
    $region34: #{core_forward.1} parent=1 // pred_check
      _
    $region35: #{core_forward.1} parent=1 // pred_check_branch
      %60 = sbr.rel (0) target = $region37
    $region36: #{core_forward.1} parent=1 // pred_region
      _
    $region37: #{core_forward.1} parent=1 // pred_fallthru
      _
    // Predicated region
    $region38: #{core_forward.1} parent=1 // pred_check
      _
    $region39: #{core_forward.1} parent=1 // pred_check_branch
      %62 = sbr.rel (0) target = $region41
    $region40: #{core_forward.1} parent=1 // pred_region
      %64 = dma.done [#allocation6], 512
    $region41: #{core_forward.1} parent=1 // pred_fallthru
      _
    // Predicated region
    $region42: #{core_forward.1} parent=1 // pred_check
      _
    $region43: #{core_forward.1} parent=1 // pred_check_branch
      %66 = sbr.rel (0) target = $region45
    $region44: #{core_forward.1} parent=1 // pred_region
      %68 = dma.done [#allocation9], 512
    $region45: #{core_forward.1} parent=1 // pred_fallthru
      _
    %v69 = vld [vmem:[%s3] sm:$0xff]
    %v70 = vld [vmem:[%s3 + $0x8] sm:$0xff]
    %v71 = vld [vmem:[%s3 + $0x10] sm:$0xff]
    %v72 = vld [vmem:[%s3 + $0x18] sm:$0xff]
    %v73 = vld [vmem:[%s4] sm:$0xff]
    %v74 = vld [vmem:[%s4 + $0x8] sm:$0xff]
    %v75 = vld [vmem:[%s4 + $0x10] sm:$0xff]
    %v76 = vld [vmem:[%s4 + $0x18] sm:$0xff]
    %v77 = vld [vmem:[%s5] sm:$0x1]
    %v78 = vld [vmem:[%s0] sm:$0xff]
    %v79 = vld [vmem:[%s0 + $0x8] sm:$0xff]
    %v81 = vperm.slane %v77, 0
    %vm83 = vcmask 261120
    %v85 = vsel %vm83, %v78, 0
    %v88 = vsel %vm83, %v79, 0
    %90 = vmatpush.msra.mxu0 0.0
    %91 = vmatpush.msra.mxu0 0.0
    %92 = vmatpush.msra.mxu0 0.0
    %93 = vmatpush.msra.mxu0 0.0
    %94 = vmatpush.msra.mxu0 0.0
    %95 = vmatpush.msra.mxu0 0.0
    %96 = vmatpush.msra.mxu0 0.0
    %97 = vmatpush.msra.mxu0 0.0
    %98 = vmatpush.msra.mxu0 0.0
    %99 = vmatpush.msra.mxu0 0.0
    %100 = vmatpush.msra.mxu0 0.0
    %101 = vmatpush.msra.mxu0 0.0
    %102 = vmatpush.msra.mxu0 %v72
    %103 = vmatpush.msra.mxu0 %v71
    %104 = vmatpush.msra.mxu0 %v70
    %105 = vmatpush.msra.mxu0 %v69
    %106 = vmatmul.f32.gmra.mxu0 %v85
    %v107 = vpop.f32.mrf.mxu0
    %v108 = vadd.f32 %v81, %v107
    %109 = vmatmul.f32.gmra.mxu0 %v88
    %v110 = vpop.f32.mrf.mxu0
    %v111 = vadd.f32 %v81, %v110
    %112 = vdwg.mxu0
    %113 = vst [vmem:[#allocation2] sm:$0xff] %v108
    %114 = vst [vmem:[#allocation2 + $0x8] sm:$0xff] %v111
    %v115 = vld [vmem:[%s1] sm:$0x3]
    %vm116 = vcmask 254976
    %117 = vst.msk [vmem:[#allocation3] sm:$0x3] %vm116, %v115
    %v118 = vld [vmem:[%s2] sm:$0x3]
    %119 = vst.msk [vmem:[#allocation4] sm:$0x3] %vm116, %v118
    %v120 = vld [vmem:[#allocation3] sm:$0x3]
    %v121 = vld [vmem:[#allocation4] sm:$0x3]
    %v122 = vld [vmem:[#allocation2] sm:$0x3]
    %v124 = vsel %vm83, %v120, 0
    %126 = vmatpush.msra.mxu0 0.0
    %127 = vmatpush.msra.mxu0 0.0
    %128 = vmatpush.msra.mxu0 0.0
    %129 = vmatpush.msra.mxu0 0.0
    %130 = vmatpush.msra.mxu0 0.0
    %131 = vmatpush.msra.mxu0 0.0
    %132 = vmatpush.msra.mxu0 0.0
    %133 = vmatpush.msra.mxu0 0.0
    %134 = vmatpush.msra.mxu0 0.0
    %135 = vmatpush.msra.mxu0 0.0
    %136 = vmatpush.msra.mxu0 0.0
    %137 = vmatpush.msra.mxu0 0.0
    %138 = vmatpush.msra.mxu0 %v76
    %139 = vmatpush.msra.mxu0 %v75
    %140 = vmatpush.msra.mxu0 %v74
    %141 = vmatpush.msra.mxu0 %v73
    %142 = vmatmul.f32.gmra.mxu0 %v124
    %v143 = vpop.f32.mrf.mxu0
    %v144 = vadd.f32 0.0, %v143
    %145 = vdwg.mxu0
    %v146 = vadd.f32 %v122, %v144
    %v147 = vxor.u32 %v146, 2147483648
    %v148 = vmul.f32 %v147, 1.442695
    %v149 = vpow.pop %v148
    %v150 = vadd.f32 %v149, 1.0
    %v151 = vrcp.pop %v150
    %v152 = vmul.f32 %v150, %v151
    %v153 = vsub.f32 1.0, %v152
    %v154 = vmul.f32 %v151, %v153
    %v155 = vadd.f32 %v151, %v154
    %vm156 = vweird.f32 %v150
    %vm157 = vweird.f32 %v151
    %vm158 = vmor %vm156, %vm157
    %v159 = vsel %vm158, %v151, %v155
    %v160 = vand.u32 2147483647, %v150
    %vm161 = vcmp.eq.f32.partialorder %v160, 8.507059e+37
    %v162 = vand.u32 %v150, 2147483648
    %v163 = vor.u32 1.1754944e-38, %v162
    %v164 = vsel %vm161, %v163, %v159
    %v165 = vmul.f32 1.0, %v164
    %v166 = vtanh.pop %v146
    %168 = vrot.lane.b32.xlu0 %v121, 32
    %v169 = vpop.permute.xlu0 %168
    %v171 = vmul.f32 %v165, %v169
    %173 = vrot.lane.b32.xlu0 %v166, 64
    %v174 = vpop.permute.xlu0 %173
    %v176 = vmul.f32 %v165, %v174
    %178 = vrot.lane.b32.xlu0 %v176, 32
    %v179 = vpop.permute.xlu0 %178
    %v181 = vadd.f32 %v171, %v179
    %v182 = vtanh.pop %v181
    %184 = vrot.lane.b32.xlu0 %v182, 64
    %v185 = vpop.permute.xlu0 %184
    %v187 = vmul.f32 %v165, %v185
    %189 = vrot.lane.b32.xlu0 %v187, 32
    %v190 = vpop.permute.xlu0 %189
    %192 = vst.msk [vmem:[#allocation3] sm:$0x3] %vm116, %v190
    %194 = vrot.lane.b32.xlu0 %v181, 96
    %v195 = vpop.permute.xlu0 %194
    %197 = vst.msk [vmem:[#allocation4] sm:$0x3] %vm116, %v195
    %198 = vst.msk [vmem:[%s9] sm:$0x3] %vm116, %v190
    %v199 = vld [vmem:[#allocation3] sm:$0x3]
    %v200 = vld [vmem:[#allocation4] sm:$0x3]
    %v201 = vld [vmem:[#allocation2 + $0x2] sm:$0x3]
    %v203 = vsel %vm83, %v199, 0
    %205 = vmatpush.msra.mxu0 0.0
    %206 = vmatpush.msra.mxu0 0.0
    %207 = vmatpush.msra.mxu0 0.0
    %208 = vmatpush.msra.mxu0 0.0
    %209 = vmatpush.msra.mxu0 0.0
    %210 = vmatpush.msra.mxu0 0.0
    %211 = vmatpush.msra.mxu0 0.0
    %212 = vmatpush.msra.mxu0 0.0
    %213 = vmatpush.msra.mxu0 0.0
    %214 = vmatpush.msra.mxu0 0.0
    %215 = vmatpush.msra.mxu0 0.0
    %216 = vmatpush.msra.mxu0 0.0
    %217 = vmatpush.msra.mxu0 %v76
    %218 = vmatpush.msra.mxu0 %v75
    %219 = vmatpush.msra.mxu0 %v74
    %220 = vmatpush.msra.mxu0 %v73
    %221 = vmatmul.f32.gmra.mxu0 %v203
    %v222 = vpop.f32.mrf.mxu0
    %v223 = vadd.f32 0.0, %v222
    %224 = vdwg.mxu0
    %v225 = vadd.f32 %v201, %v223
    %v226 = vxor.u32 %v225, 2147483648
    %v227 = vmul.f32 %v226, 1.442695
    %v228 = vpow.pop %v227
    %v229 = vadd.f32 %v228, 1.0
    %v230 = vrcp.pop %v229
    %v231 = vmul.f32 %v229, %v230
    %v232 = vsub.f32 1.0, %v231
    %v233 = vmul.f32 %v230, %v232
    %v234 = vadd.f32 %v230, %v233
    %vm235 = vweird.f32 %v229
    %vm236 = vweird.f32 %v230
    %vm237 = vmor %vm235, %vm236
    %v238 = vsel %vm237, %v230, %v234
    %v239 = vand.u32 2147483647, %v229
    %vm240 = vcmp.eq.f32.partialorder %v239, 8.507059e+37
    %v241 = vand.u32 %v229, 2147483648
    %v242 = vor.u32 1.1754944e-38, %v241
    %v243 = vsel %vm240, %v242, %v238
    %v244 = vmul.f32 1.0, %v243
    %v245 = vtanh.pop %v225
    %247 = vrot.lane.b32.xlu0 %v200, 32
    %v248 = vpop.permute.xlu0 %247
    %v250 = vmul.f32 %v244, %v248
    %252 = vrot.lane.b32.xlu0 %v245, 64
    %v253 = vpop.permute.xlu0 %252
    %v255 = vmul.f32 %v244, %v253
    %257 = vrot.lane.b32.xlu0 %v255, 32
    %v258 = vpop.permute.xlu0 %257
    %v260 = vadd.f32 %v250, %v258
    %v261 = vtanh.pop %v260
    %263 = vrot.lane.b32.xlu0 %v261, 64
    %v264 = vpop.permute.xlu0 %263
    %v266 = vmul.f32 %v244, %v264
    %268 = vrot.lane.b32.xlu0 %v266, 32
    %v269 = vpop.permute.xlu0 %268
    %271 = vst.msk [vmem:[#allocation3] sm:$0x3] %vm116, %v269
    %273 = vrot.lane.b32.xlu0 %v260, 96
    %v274 = vpop.permute.xlu0 %273
    %276 = vst.msk [vmem:[#allocation4] sm:$0x3] %vm116, %v274
    %277 = vst.msk [vmem:[%s9 + $0x2] sm:$0x3] %vm116, %v269
    %v278 = vld [vmem:[#allocation3] sm:$0x3]
    %v279 = vld [vmem:[#allocation4] sm:$0x3]
    %v280 = vld [vmem:[#allocation2 + $0x4] sm:$0x3]
    %v282 = vsel %vm83, %v278, 0
    %284 = vmatpush.msra.mxu0 0.0
    %285 = vmatpush.msra.mxu0 0.0
    %286 = vmatpush.msra.mxu0 0.0
    %287 = vmatpush.msra.mxu0 0.0
    %288 = vmatpush.msra.mxu0 0.0
    %289 = vmatpush.msra.mxu0 0.0
    %290 = vmatpush.msra.mxu0 0.0
    %291 = vmatpush.msra.mxu0 0.0
    %292 = vmatpush.msra.mxu0 0.0
    %293 = vmatpush.msra.mxu0 0.0
    %294 = vmatpush.msra.mxu0 0.0
    %295 = vmatpush.msra.mxu0 0.0
    %296 = vmatpush.msra.mxu0 %v76
    %297 = vmatpush.msra.mxu0 %v75
    %298 = vmatpush.msra.mxu0 %v74
    %299 = vmatpush.msra.mxu0 %v73
    %300 = vmatmul.f32.gmra.mxu0 %v282
    %v301 = vpop.f32.mrf.mxu0
    %v302 = vadd.f32 0.0, %v301
    %303 = vdwg.mxu0
    %v304 = vadd.f32 %v280, %v302
    %v305 = vxor.u32 %v304, 2147483648
    %v306 = vmul.f32 %v305, 1.442695
    %v307 = vpow.pop %v306
    %v308 = vadd.f32 %v307, 1.0
    %v309 = vrcp.pop %v308
    %v310 = vmul.f32 %v308, %v309
    %v311 = vsub.f32 1.0, %v310
    %v312 = vmul.f32 %v309, %v311
    %v313 = vadd.f32 %v309, %v312
    %vm314 = vweird.f32 %v308
    %vm315 = vweird.f32 %v309
    %vm316 = vmor %vm314, %vm315
    %v317 = vsel %vm316, %v309, %v313
    %v318 = vand.u32 2147483647, %v308
    %vm319 = vcmp.eq.f32.partialorder %v318, 8.507059e+37
    %v320 = vand.u32 %v308, 2147483648
    %v321 = vor.u32 1.1754944e-38, %v320
    %v322 = vsel %vm319, %v321, %v317
    %v323 = vmul.f32 1.0, %v322
    %v324 = vtanh.pop %v304
    %326 = vrot.lane.b32.xlu0 %v279, 32
    %v327 = vpop.permute.xlu0 %326
    %v329 = vmul.f32 %v323, %v327
    %331 = vrot.lane.b32.xlu0 %v324, 64
    %v332 = vpop.permute.xlu0 %331
    %v334 = vmul.f32 %v323, %v332
    %336 = vrot.lane.b32.xlu0 %v334, 32
    %v337 = vpop.permute.xlu0 %336
    %v339 = vadd.f32 %v329, %v337
    %v340 = vtanh.pop %v339
    %342 = vrot.lane.b32.xlu0 %v340, 64
    %v343 = vpop.permute.xlu0 %342
    %v345 = vmul.f32 %v323, %v343
    %347 = vrot.lane.b32.xlu0 %v345, 32
    %v348 = vpop.permute.xlu0 %347
    %350 = vst.msk [vmem:[#allocation3] sm:$0x3] %vm116, %v348
    %352 = vrot.lane.b32.xlu0 %v339, 96
    %v353 = vpop.permute.xlu0 %352
    %355 = vst.msk [vmem:[#allocation4] sm:$0x3] %vm116, %v353
    %356 = vst.msk [vmem:[%s9 + $0x4] sm:$0x3] %vm116, %v348
    %v357 = vld [vmem:[#allocation3] sm:$0x3]
    %v358 = vld [vmem:[#allocation4] sm:$0x3]
    %v359 = vld [vmem:[#allocation2 + $0x6] sm:$0x3]
    %v361 = vsel %vm83, %v357, 0
    %363 = vmatpush.msra.mxu0 0.0
    %364 = vmatpush.msra.mxu0 0.0
    %365 = vmatpush.msra.mxu0 0.0
    %366 = vmatpush.msra.mxu0 0.0
    %367 = vmatpush.msra.mxu0 0.0
    %368 = vmatpush.msra.mxu0 0.0
    %369 = vmatpush.msra.mxu0 0.0
    %370 = vmatpush.msra.mxu0 0.0
    %371 = vmatpush.msra.mxu0 0.0
    %372 = vmatpush.msra.mxu0 0.0
    %373 = vmatpush.msra.mxu0 0.0
    %374 = vmatpush.msra.mxu0 0.0
    %375 = vmatpush.msra.mxu0 %v76
    %376 = vmatpush.msra.mxu0 %v75
    %377 = vmatpush.msra.mxu0 %v74
    %378 = vmatpush.msra.mxu0 %v73
    %379 = vmatmul.f32.gmra.mxu0 %v361
    %v380 = vpop.f32.mrf.mxu0
    %v381 = vadd.f32 0.0, %v380
    %382 = vdwg.mxu0
    %v383 = vadd.f32 %v359, %v381
    %v384 = vxor.u32 %v383, 2147483648
    %v385 = vmul.f32 %v384, 1.442695
    %v386 = vpow.pop %v385
    %v387 = vadd.f32 %v386, 1.0
    %v388 = vrcp.pop %v387
    %v389 = vmul.f32 %v387, %v388
    %v390 = vsub.f32 1.0, %v389
    %v391 = vmul.f32 %v388, %v390
    %v392 = vadd.f32 %v388, %v391
    %vm393 = vweird.f32 %v387
    %vm394 = vweird.f32 %v388
    %vm395 = vmor %vm393, %vm394
    %v396 = vsel %vm395, %v388, %v392
    %v397 = vand.u32 2147483647, %v387
    %vm398 = vcmp.eq.f32.partialorder %v397, 8.507059e+37
    %v399 = vand.u32 %v387, 2147483648
    %v400 = vor.u32 1.1754944e-38, %v399
    %v401 = vsel %vm398, %v400, %v396
    %v402 = vmul.f32 1.0, %v401
    %v403 = vtanh.pop %v383
    %405 = vrot.lane.b32.xlu0 %v358, 32
    %v406 = vpop.permute.xlu0 %405
    %v408 = vmul.f32 %v402, %v406
    %410 = vrot.lane.b32.xlu0 %v403, 64
    %v411 = vpop.permute.xlu0 %410
    %v413 = vmul.f32 %v402, %v411
    %415 = vrot.lane.b32.xlu0 %v413, 32
    %v416 = vpop.permute.xlu0 %415
    %v418 = vadd.f32 %v408, %v416
    %v419 = vtanh.pop %v418
    %421 = vrot.lane.b32.xlu0 %v419, 64
    %v422 = vpop.permute.xlu0 %421
    %v424 = vmul.f32 %v402, %v422
    %426 = vrot.lane.b32.xlu0 %v424, 32
    %v427 = vpop.permute.xlu0 %426
    %429 = vst.msk [vmem:[#allocation3] sm:$0x3] %vm116, %v427
    %431 = vrot.lane.b32.xlu0 %v418, 96
    %v432 = vpop.permute.xlu0 %431
    %434 = vst.msk [vmem:[#allocation4] sm:$0x3] %vm116, %v432
    %435 = vst.msk [vmem:[%s9 + $0x6] sm:$0x3] %vm116, %v427
    %v436 = vld [vmem:[#allocation3] sm:$0x3]
    %v437 = vld [vmem:[#allocation4] sm:$0x3]
    %v438 = vld [vmem:[#allocation2 + $0x8] sm:$0x3]
    %v440 = vsel %vm83, %v436, 0
    %442 = vmatpush.msra.mxu0 0.0
    %443 = vmatpush.msra.mxu0 0.0
    %444 = vmatpush.msra.mxu0 0.0
    %445 = vmatpush.msra.mxu0 0.0
    %446 = vmatpush.msra.mxu0 0.0
    %447 = vmatpush.msra.mxu0 0.0
    %448 = vmatpush.msra.mxu0 0.0
    %449 = vmatpush.msra.mxu0 0.0
    %450 = vmatpush.msra.mxu0 0.0
    %451 = vmatpush.msra.mxu0 0.0
    %452 = vmatpush.msra.mxu0 0.0
    %453 = vmatpush.msra.mxu0 0.0
    %454 = vmatpush.msra.mxu0 %v76
    %455 = vmatpush.msra.mxu0 %v75
    %456 = vmatpush.msra.mxu0 %v74
    %457 = vmatpush.msra.mxu0 %v73
    %458 = vmatmul.f32.gmra.mxu0 %v440
    %v459 = vpop.f32.mrf.mxu0
    %v460 = vadd.f32 0.0, %v459
    %461 = vdwg.mxu0
    %v462 = vadd.f32 %v438, %v460
    %v463 = vxor.u32 %v462, 2147483648
    %v464 = vmul.f32 %v463, 1.442695
    %v465 = vpow.pop %v464
    %v466 = vadd.f32 %v465, 1.0
    %v467 = vrcp.pop %v466
    %v468 = vmul.f32 %v466, %v467
    %v469 = vsub.f32 1.0, %v468
    %v470 = vmul.f32 %v467, %v469
    %v471 = vadd.f32 %v467, %v470
    %vm472 = vweird.f32 %v466
    %vm473 = vweird.f32 %v467
    %vm474 = vmor %vm472, %vm473
    %v475 = vsel %vm474, %v467, %v471
    %v476 = vand.u32 2147483647, %v466
    %vm477 = vcmp.eq.f32.partialorder %v476, 8.507059e+37
    %v478 = vand.u32 %v466, 2147483648
    %v479 = vor.u32 1.1754944e-38, %v478
    %v480 = vsel %vm477, %v479, %v475
    %v481 = vmul.f32 1.0, %v480
    %v482 = vtanh.pop %v462
    %484 = vrot.lane.b32.xlu0 %v437, 32
    %v485 = vpop.permute.xlu0 %484
    %v487 = vmul.f32 %v481, %v485
    %489 = vrot.lane.b32.xlu0 %v482, 64
    %v490 = vpop.permute.xlu0 %489
    %v492 = vmul.f32 %v481, %v490
    %494 = vrot.lane.b32.xlu0 %v492, 32
    %v495 = vpop.permute.xlu0 %494
    %v497 = vadd.f32 %v487, %v495
    %v498 = vtanh.pop %v497
    %500 = vrot.lane.b32.xlu0 %v498, 64
    %v501 = vpop.permute.xlu0 %500
    %v503 = vmul.f32 %v481, %v501
    %505 = vrot.lane.b32.xlu0 %v503, 32
    %v506 = vpop.permute.xlu0 %505
    %508 = vst.msk [vmem:[#allocation3] sm:$0x3] %vm116, %v506
    %510 = vrot.lane.b32.xlu0 %v497, 96
    %v511 = vpop.permute.xlu0 %510
    %513 = vst.msk [vmem:[#allocation4] sm:$0x3] %vm116, %v511
    %514 = vst.msk [vmem:[%s9 + $0x8] sm:$0x3] %vm116, %v506
    %v515 = vld [vmem:[#allocation3] sm:$0x3]
    %v516 = vld [vmem:[#allocation4] sm:$0x3]
    %v517 = vld [vmem:[#allocation2 + $0xa] sm:$0x3]
    %v519 = vsel %vm83, %v515, 0
    %521 = vmatpush.msra.mxu0 0.0
    %522 = vmatpush.msra.mxu0 0.0
    %523 = vmatpush.msra.mxu0 0.0
    %524 = vmatpush.msra.mxu0 0.0
    %525 = vmatpush.msra.mxu0 0.0
    %526 = vmatpush.msra.mxu0 0.0
    %527 = vmatpush.msra.mxu0 0.0
    %528 = vmatpush.msra.mxu0 0.0
    %529 = vmatpush.msra.mxu0 0.0
    %530 = vmatpush.msra.mxu0 0.0
    %531 = vmatpush.msra.mxu0 0.0
    %532 = vmatpush.msra.mxu0 0.0
    %533 = vmatpush.msra.mxu0 %v76
    %534 = vmatpush.msra.mxu0 %v75
    %535 = vmatpush.msra.mxu0 %v74
    %536 = vmatpush.msra.mxu0 %v73
    %537 = vmatmul.f32.gmra.mxu0 %v519
    %v538 = vpop.f32.mrf.mxu0
    %v539 = vadd.f32 0.0, %v538
    %540 = vdwg.mxu0
    %v541 = vadd.f32 %v517, %v539
    %v542 = vxor.u32 %v541, 2147483648
    %v543 = vmul.f32 %v542, 1.442695
    %v544 = vpow.pop %v543
    %v545 = vadd.f32 %v544, 1.0
    %v546 = vrcp.pop %v545
    %v547 = vmul.f32 %v545, %v546
    %v548 = vsub.f32 1.0, %v547
    %v549 = vmul.f32 %v546, %v548
    %v550 = vadd.f32 %v546, %v549
    %vm551 = vweird.f32 %v545
    %vm552 = vweird.f32 %v546
    %vm553 = vmor %vm551, %vm552
    %v554 = vsel %vm553, %v546, %v550
    %v555 = vand.u32 2147483647, %v545
    %vm556 = vcmp.eq.f32.partialorder %v555, 8.507059e+37
    %v557 = vand.u32 %v545, 2147483648
    %v558 = vor.u32 1.1754944e-38, %v557
    %v559 = vsel %vm556, %v558, %v554
    %v560 = vmul.f32 1.0, %v559
    %v561 = vtanh.pop %v541
    %563 = vrot.lane.b32.xlu0 %v516, 32
    %v564 = vpop.permute.xlu0 %563
    %v566 = vmul.f32 %v560, %v564
    %568 = vrot.lane.b32.xlu0 %v561, 64
    %v569 = vpop.permute.xlu0 %568
    %v571 = vmul.f32 %v560, %v569
    %573 = vrot.lane.b32.xlu0 %v571, 32
    %v574 = vpop.permute.xlu0 %573
    %v576 = vadd.f32 %v566, %v574
    %v577 = vtanh.pop %v576
    %579 = vrot.lane.b32.xlu0 %v577, 64
    %v580 = vpop.permute.xlu0 %579
    %v582 = vmul.f32 %v560, %v580
    %584 = vrot.lane.b32.xlu0 %v582, 32
    %v585 = vpop.permute.xlu0 %584
    %587 = vst.msk [vmem:[#allocation3] sm:$0x3] %vm116, %v585
    %589 = vrot.lane.b32.xlu0 %v576, 96
    %v590 = vpop.permute.xlu0 %589
    %592 = vst.msk [vmem:[#allocation4] sm:$0x3] %vm116, %v590
    %593 = vst.msk [vmem:[%s9 + $0xa] sm:$0x3] %vm116, %v585
    %v594 = vld [vmem:[#allocation3] sm:$0x3]
    %v595 = vld [vmem:[#allocation4] sm:$0x3]
    %v596 = vld [vmem:[#allocation2 + $0xc] sm:$0x3]
    %v598 = vsel %vm83, %v594, 0
    %600 = vmatpush.msra.mxu0 0.0
    %601 = vmatpush.msra.mxu0 0.0
    %602 = vmatpush.msra.mxu0 0.0
    %603 = vmatpush.msra.mxu0 0.0
    %604 = vmatpush.msra.mxu0 0.0
    %605 = vmatpush.msra.mxu0 0.0
    %606 = vmatpush.msra.mxu0 0.0
    %607 = vmatpush.msra.mxu0 0.0
    %608 = vmatpush.msra.mxu0 0.0
    %609 = vmatpush.msra.mxu0 0.0
    %610 = vmatpush.msra.mxu0 0.0
    %611 = vmatpush.msra.mxu0 0.0
    %612 = vmatpush.msra.mxu0 %v76
    %613 = vmatpush.msra.mxu0 %v75
    %614 = vmatpush.msra.mxu0 %v74
    %615 = vmatpush.msra.mxu0 %v73
    %616 = vmatmul.f32.gmra.mxu0 %v598
    %v617 = vpop.f32.mrf.mxu0
    %v618 = vadd.f32 0.0, %v617
    %619 = vdwg.mxu0
    %v620 = vadd.f32 %v596, %v618
    %v621 = vxor.u32 %v620, 2147483648
    %v622 = vmul.f32 %v621, 1.442695
    %v623 = vpow.pop %v622
    %v624 = vadd.f32 %v623, 1.0
    %v625 = vrcp.pop %v624
    %v626 = vmul.f32 %v624, %v625
    %v627 = vsub.f32 1.0, %v626
    %v628 = vmul.f32 %v625, %v627
    %v629 = vadd.f32 %v625, %v628
    %vm630 = vweird.f32 %v624
    %vm631 = vweird.f32 %v625
    %vm632 = vmor %vm630, %vm631
    %v633 = vsel %vm632, %v625, %v629
    %v634 = vand.u32 2147483647, %v624
    %vm635 = vcmp.eq.f32.partialorder %v634, 8.507059e+37
    %v636 = vand.u32 %v624, 2147483648
    %v637 = vor.u32 1.1754944e-38, %v636
    %v638 = vsel %vm635, %v637, %v633
    %v639 = vmul.f32 1.0, %v638
    %v640 = vtanh.pop %v620
    %642 = vrot.lane.b32.xlu0 %v595, 32
    %v643 = vpop.permute.xlu0 %642
    %v645 = vmul.f32 %v639, %v643
    %647 = vrot.lane.b32.xlu0 %v640, 64
    %v648 = vpop.permute.xlu0 %647
    %v650 = vmul.f32 %v639, %v648
    %652 = vrot.lane.b32.xlu0 %v650, 32
    %v653 = vpop.permute.xlu0 %652
    %v655 = vadd.f32 %v645, %v653
    %v656 = vtanh.pop %v655
    %658 = vrot.lane.b32.xlu0 %v656, 64
    %v659 = vpop.permute.xlu0 %658
    %v661 = vmul.f32 %v639, %v659
    %663 = vrot.lane.b32.xlu0 %v661, 32
    %v664 = vpop.permute.xlu0 %663
    %666 = vst.msk [vmem:[#allocation3] sm:$0x3] %vm116, %v664
    %668 = vrot.lane.b32.xlu0 %v655, 96
    %v669 = vpop.permute.xlu0 %668
    %671 = vst.msk [vmem:[#allocation4] sm:$0x3] %vm116, %v669
    %672 = vst.msk [vmem:[%s9 + $0xc] sm:$0x3] %vm116, %v664
    %v673 = vld [vmem:[#allocation3] sm:$0x3]
    %v674 = vld [vmem:[#allocation4] sm:$0x3]
    %v675 = vld [vmem:[#allocation2 + $0xe] sm:$0x3]
    %v677 = vsel %vm83, %v673, 0
    %679 = vmatpush.msra.mxu0 0.0
    %680 = vmatpush.msra.mxu0 0.0
    %681 = vmatpush.msra.mxu0 0.0
    %682 = vmatpush.msra.mxu0 0.0
    %683 = vmatpush.msra.mxu0 0.0
    %684 = vmatpush.msra.mxu0 0.0
    %685 = vmatpush.msra.mxu0 0.0
    %686 = vmatpush.msra.mxu0 0.0
    %687 = vmatpush.msra.mxu0 0.0
    %688 = vmatpush.msra.mxu0 0.0
    %689 = vmatpush.msra.mxu0 0.0
    %690 = vmatpush.msra.mxu0 0.0
    %691 = vmatpush.msra.mxu0 %v76
    %692 = vmatpush.msra.mxu0 %v75
    %693 = vmatpush.msra.mxu0 %v74
    %694 = vmatpush.msra.mxu0 %v73
    %695 = vmatmul.f32.gmra.mxu0 %v677
    %v696 = vpop.f32.mrf.mxu0
    %v697 = vadd.f32 0.0, %v696
    %698 = vdwg.mxu0
    %v699 = vadd.f32 %v675, %v697
    %v700 = vxor.u32 %v699, 2147483648
    %v701 = vmul.f32 %v700, 1.442695
    %v702 = vpow.pop %v701
    %v703 = vadd.f32 %v702, 1.0
    %v704 = vrcp.pop %v703
    %v705 = vmul.f32 %v703, %v704
    %v706 = vsub.f32 1.0, %v705
    %v707 = vmul.f32 %v704, %v706
    %v708 = vadd.f32 %v704, %v707
    %vm709 = vweird.f32 %v703
    %vm710 = vweird.f32 %v704
    %vm711 = vmor %vm709, %vm710
    %v712 = vsel %vm711, %v704, %v708
    %v713 = vand.u32 2147483647, %v703
    %vm714 = vcmp.eq.f32.partialorder %v713, 8.507059e+37
    %v715 = vand.u32 %v703, 2147483648
    %v716 = vor.u32 1.1754944e-38, %v715
    %v717 = vsel %vm714, %v716, %v712
    %v718 = vmul.f32 1.0, %v717
    %v719 = vtanh.pop %v699
    %721 = vrot.lane.b32.xlu0 %v674, 32
    %v722 = vpop.permute.xlu0 %721
    %v724 = vmul.f32 %v718, %v722
    %726 = vrot.lane.b32.xlu0 %v719, 64
    %v727 = vpop.permute.xlu0 %726
    %v729 = vmul.f32 %v718, %v727
    %731 = vrot.lane.b32.xlu0 %v729, 32
    %v732 = vpop.permute.xlu0 %731
    %v734 = vadd.f32 %v724, %v732
    %v735 = vtanh.pop %v734
    %737 = vrot.lane.b32.xlu0 %v735, 64
    %v738 = vpop.permute.xlu0 %737
    %v740 = vmul.f32 %v718, %v738
    %742 = vrot.lane.b32.xlu0 %v740, 32
    %v743 = vpop.permute.xlu0 %742
    %745 = vst.msk [vmem:[#allocation3] sm:$0x3] %vm116, %v743
    %747 = vrot.lane.b32.xlu0 %v734, 96
    %v748 = vpop.permute.xlu0 %747
    %750 = vst.msk [vmem:[#allocation4] sm:$0x3] %vm116, %v748
    %751 = vst.msk [vmem:[%s9 + $0xe] sm:$0x3] %vm116, %v743
    %v752 = vld [vmem:[#allocation3] sm:$0x3]
    %753 = vst.msk [vmem:[#allocation10] sm:$0x3] %vm116, %v752
    %v754 = vld [vmem:[#allocation4] sm:$0x3]
    %755 = vst.msk [vmem:[#allocation11] sm:$0x3] %vm116, %v754
    %v756 = vld [vmem:[#allocation5] sm:$0xff]
    %v757 = vld [vmem:[#allocation5 + $0x8] sm:$0xff]
    %v758 = vld [vmem:[#allocation5 + $0x10] sm:$0xff]
    %v759 = vld [vmem:[#allocation5 + $0x18] sm:$0xff]
    %v760 = vld [vmem:[#allocation8] sm:$0xff]
    %v761 = vld [vmem:[#allocation8 + $0x8] sm:$0xff]
    %v762 = vld [vmem:[#allocation8 + $0x10] sm:$0xff]
    %v763 = vld [vmem:[#allocation8 + $0x18] sm:$0xff]
    %v764 = vld [vmem:[%s8] sm:$0x1]
    %v765 = vld [vmem:[%s9] sm:$0xff]
    %v766 = vld [vmem:[%s9 + $0x8] sm:$0xff]
    %v768 = vperm.slane %v764, 0
    %v771 = vsel %vm83, %v765, 0
    %v774 = vsel %vm83, %v766, 0
    %776 = vmatpush.msra.mxu0 0.0
    %777 = vmatpush.msra.mxu0 0.0
    %778 = vmatpush.msra.mxu0 0.0
    %779 = vmatpush.msra.mxu0 0.0
    %780 = vmatpush.msra.mxu0 0.0
    %781 = vmatpush.msra.mxu0 0.0
    %782 = vmatpush.msra.mxu0 0.0
    %783 = vmatpush.msra.mxu0 0.0
    %784 = vmatpush.msra.mxu0 0.0
    %785 = vmatpush.msra.mxu0 0.0
    %786 = vmatpush.msra.mxu0 0.0
    %787 = vmatpush.msra.mxu0 0.0
    %788 = vmatpush.msra.mxu0 %v759
    %789 = vmatpush.msra.mxu0 %v758
    %790 = vmatpush.msra.mxu0 %v757
    %791 = vmatpush.msra.mxu0 %v756
    %792 = vmatmul.f32.gmra.mxu0 %v771
    %v793 = vpop.f32.mrf.mxu0
    %v794 = vadd.f32 %v768, %v793
    %795 = vmatmul.f32.gmra.mxu0 %v774
    %v796 = vpop.f32.mrf.mxu0
    %v797 = vadd.f32 %v768, %v796
    %798 = vdwg.mxu0
    %799 = vst [vmem:[#allocation2] sm:$0xff] %v794
    %800 = vst [vmem:[#allocation2 + $0x8] sm:$0xff] %v797
    %s801 = scalar_lea.vmem %s1, 2
    %v802 = vld [vmem:[%s801] sm:$0x3]
    %803 = vst.msk [vmem:[#allocation3] sm:$0x3] %vm116, %v802
    %s804 = scalar_lea.vmem %s2, 2
    %v805 = vld [vmem:[%s804] sm:$0x3]
    %806 = vst.msk [vmem:[#allocation4] sm:$0x3] %vm116, %v805
    %v807 = vld [vmem:[#allocation3] sm:$0x3]
    %v808 = vld [vmem:[#allocation4] sm:$0x3]
    %v809 = vld [vmem:[#allocation2] sm:$0x3]
    %v811 = vsel %vm83, %v807, 0
    %813 = vmatpush.msra.mxu0 0.0
    %814 = vmatpush.msra.mxu0 0.0
    %815 = vmatpush.msra.mxu0 0.0
    %816 = vmatpush.msra.mxu0 0.0
    %817 = vmatpush.msra.mxu0 0.0
    %818 = vmatpush.msra.mxu0 0.0
    %819 = vmatpush.msra.mxu0 0.0
    %820 = vmatpush.msra.mxu0 0.0
    %821 = vmatpush.msra.mxu0 0.0
    %822 = vmatpush.msra.mxu0 0.0
    %823 = vmatpush.msra.mxu0 0.0
    %824 = vmatpush.msra.mxu0 0.0
    %825 = vmatpush.msra.mxu0 %v763
    %826 = vmatpush.msra.mxu0 %v762
    %827 = vmatpush.msra.mxu0 %v761
    %828 = vmatpush.msra.mxu0 %v760
    %829 = vmatmul.f32.gmra.mxu0 %v811
    %v830 = vpop.f32.mrf.mxu0
    %v831 = vadd.f32 0.0, %v830
    %832 = vdwg.mxu0
    %v833 = vadd.f32 %v809, %v831
    %v834 = vxor.u32 %v833, 2147483648
    %v835 = vmul.f32 %v834, 1.442695
    %v836 = vpow.pop %v835
    %v837 = vadd.f32 %v836, 1.0
    %v838 = vrcp.pop %v837
    %v839 = vmul.f32 %v837, %v838
    %v840 = vsub.f32 1.0, %v839
    %v841 = vmul.f32 %v838, %v840
    %v842 = vadd.f32 %v838, %v841
    %vm843 = vweird.f32 %v837
    %vm844 = vweird.f32 %v838
    %vm845 = vmor %vm843, %vm844
    %v846 = vsel %vm845, %v838, %v842
    %v847 = vand.u32 2147483647, %v837
    %vm848 = vcmp.eq.f32.partialorder %v847, 8.507059e+37
    %v849 = vand.u32 %v837, 2147483648
    %v850 = vor.u32 1.1754944e-38, %v849
    %v851 = vsel %vm848, %v850, %v846
    %v852 = vmul.f32 1.0, %v851
    %v853 = vtanh.pop %v833
    %855 = vrot.lane.b32.xlu0 %v808, 32
    %v856 = vpop.permute.xlu0 %855
    %v858 = vmul.f32 %v852, %v856
    %860 = vrot.lane.b32.xlu0 %v853, 64
    %v861 = vpop.permute.xlu0 %860
    %v863 = vmul.f32 %v852, %v861
    %865 = vrot.lane.b32.xlu0 %v863, 32
    %v866 = vpop.permute.xlu0 %865
    %v868 = vadd.f32 %v858, %v866
    %v869 = vtanh.pop %v868
    %871 = vrot.lane.b32.xlu0 %v869, 64
    %v872 = vpop.permute.xlu0 %871
    %v874 = vmul.f32 %v852, %v872
    %876 = vrot.lane.b32.xlu0 %v874, 32
    %v877 = vpop.permute.xlu0 %876
    %879 = vst.msk [vmem:[#allocation3] sm:$0x3] %vm116, %v877
    %881 = vrot.lane.b32.xlu0 %v868, 96
    %v882 = vpop.permute.xlu0 %881
    %884 = vst.msk [vmem:[#allocation4] sm:$0x3] %vm116, %v882
    %885 = vst.msk [vmem:[%s9] sm:$0x3] %vm116, %v877
    %v886 = vld [vmem:[#allocation3] sm:$0x3]
    %v887 = vld [vmem:[#allocation4] sm:$0x3]
    %v888 = vld [vmem:[#allocation2 + $0x2] sm:$0x3]
    %v890 = vsel %vm83, %v886, 0
    %892 = vmatpush.msra.mxu0 0.0
    %893 = vmatpush.msra.mxu0 0.0
    %894 = vmatpush.msra.mxu0 0.0
    %895 = vmatpush.msra.mxu0 0.0
    %896 = vmatpush.msra.mxu0 0.0
    %897 = vmatpush.msra.mxu0 0.0
    %898 = vmatpush.msra.mxu0 0.0
    %899 = vmatpush.msra.mxu0 0.0
    %900 = vmatpush.msra.mxu0 0.0
    %901 = vmatpush.msra.mxu0 0.0
    %902 = vmatpush.msra.mxu0 0.0
    %903 = vmatpush.msra.mxu0 0.0
    %904 = vmatpush.msra.mxu0 %v763
    %905 = vmatpush.msra.mxu0 %v762
    %906 = vmatpush.msra.mxu0 %v761
    %907 = vmatpush.msra.mxu0 %v760
    %908 = vmatmul.f32.gmra.mxu0 %v890
    %v909 = vpop.f32.mrf.mxu0
    %v910 = vadd.f32 0.0, %v909
    %911 = vdwg.mxu0
    %v912 = vadd.f32 %v888, %v910
    %v913 = vxor.u32 %v912, 2147483648
    %v914 = vmul.f32 %v913, 1.442695
    %v915 = vpow.pop %v914
    %v916 = vadd.f32 %v915, 1.0
    %v917 = vrcp.pop %v916
    %v918 = vmul.f32 %v916, %v917
    %v919 = vsub.f32 1.0, %v918
    %v920 = vmul.f32 %v917, %v919
    %v921 = vadd.f32 %v917, %v920
    %vm922 = vweird.f32 %v916
    %vm923 = vweird.f32 %v917
    %vm924 = vmor %vm922, %vm923
    %v925 = vsel %vm924, %v917, %v921
    %v926 = vand.u32 2147483647, %v916
    %vm927 = vcmp.eq.f32.partialorder %v926, 8.507059e+37
    %v928 = vand.u32 %v916, 2147483648
    %v929 = vor.u32 1.1754944e-38, %v928
    %v930 = vsel %vm927, %v929, %v925
    %v931 = vmul.f32 1.0, %v930
    %v932 = vtanh.pop %v912
    %934 = vrot.lane.b32.xlu0 %v887, 32
    %v935 = vpop.permute.xlu0 %934
    %v937 = vmul.f32 %v931, %v935
    %939 = vrot.lane.b32.xlu0 %v932, 64
    %v940 = vpop.permute.xlu0 %939
    %v942 = vmul.f32 %v931, %v940
    %944 = vrot.lane.b32.xlu0 %v942, 32
    %v945 = vpop.permute.xlu0 %944
    %v947 = vadd.f32 %v937, %v945
    %v948 = vtanh.pop %v947
    %950 = vrot.lane.b32.xlu0 %v948, 64
    %v951 = vpop.permute.xlu0 %950
    %v953 = vmul.f32 %v931, %v951
    %955 = vrot.lane.b32.xlu0 %v953, 32
    %v956 = vpop.permute.xlu0 %955
    %958 = vst.msk [vmem:[#allocation3] sm:$0x3] %vm116, %v956
    %960 = vrot.lane.b32.xlu0 %v947, 96
    %v961 = vpop.permute.xlu0 %960
    %963 = vst.msk [vmem:[#allocation4] sm:$0x3] %vm116, %v961
    %964 = vst.msk [vmem:[%s9 + $0x2] sm:$0x3] %vm116, %v956
    %v965 = vld [vmem:[#allocation3] sm:$0x3]
    %v966 = vld [vmem:[#allocation4] sm:$0x3]
    %v967 = vld [vmem:[#allocation2 + $0x4] sm:$0x3]
    %v969 = vsel %vm83, %v965, 0
    %971 = vmatpush.msra.mxu0 0.0
    %972 = vmatpush.msra.mxu0 0.0
    %973 = vmatpush.msra.mxu0 0.0
    %974 = vmatpush.msra.mxu0 0.0
    %975 = vmatpush.msra.mxu0 0.0
    %976 = vmatpush.msra.mxu0 0.0
    %977 = vmatpush.msra.mxu0 0.0
    %978 = vmatpush.msra.mxu0 0.0
    %979 = vmatpush.msra.mxu0 0.0
    %980 = vmatpush.msra.mxu0 0.0
    %981 = vmatpush.msra.mxu0 0.0
    %982 = vmatpush.msra.mxu0 0.0
    %983 = vmatpush.msra.mxu0 %v763
    %984 = vmatpush.msra.mxu0 %v762
    %985 = vmatpush.msra.mxu0 %v761
    %986 = vmatpush.msra.mxu0 %v760
    %987 = vmatmul.f32.gmra.mxu0 %v969
    %v988 = vpop.f32.mrf.mxu0
    %v989 = vadd.f32 0.0, %v988
    %990 = vdwg.mxu0
    %v991 = vadd.f32 %v967, %v989
    %v992 = vxor.u32 %v991, 2147483648
    %v993 = vmul.f32 %v992, 1.442695
    %v994 = vpow.pop %v993
    %v995 = vadd.f32 %v994, 1.0
    %v996 = vrcp.pop %v995
    %v997 = vmul.f32 %v995, %v996
    %v998 = vsub.f32 1.0, %v997
    %v999 = vmul.f32 %v996, %v998
    %v1000 = vadd.f32 %v996, %v999
    %vm1001 = vweird.f32 %v995
    %vm1002 = vweird.f32 %v996
    %vm1003 = vmor %vm1001, %vm1002
    %v1004 = vsel %vm1003, %v996, %v1000
    %v1005 = vand.u32 2147483647, %v995
    %vm1006 = vcmp.eq.f32.partialorder %v1005, 8.507059e+37
    %v1007 = vand.u32 %v995, 2147483648
    %v1008 = vor.u32 1.1754944e-38, %v1007
    %v1009 = vsel %vm1006, %v1008, %v1004
    %v1010 = vmul.f32 1.0, %v1009
    %v1011 = vtanh.pop %v991
    %1013 = vrot.lane.b32.xlu0 %v966, 32
    %v1014 = vpop.permute.xlu0 %1013
    %v1016 = vmul.f32 %v1010, %v1014
    %1018 = vrot.lane.b32.xlu0 %v1011, 64
    %v1019 = vpop.permute.xlu0 %1018
    %v1021 = vmul.f32 %v1010, %v1019
    %1023 = vrot.lane.b32.xlu0 %v1021, 32
    %v1024 = vpop.permute.xlu0 %1023
    %v1026 = vadd.f32 %v1016, %v1024
    %v1027 = vtanh.pop %v1026
    %1029 = vrot.lane.b32.xlu0 %v1027, 64
    %v1030 = vpop.permute.xlu0 %1029
    %v1032 = vmul.f32 %v1010, %v1030
    %1034 = vrot.lane.b32.xlu0 %v1032, 32
    %v1035 = vpop.permute.xlu0 %1034
    %1037 = vst.msk [vmem:[#allocation3] sm:$0x3] %vm116, %v1035
    %1039 = vrot.lane.b32.xlu0 %v1026, 96
    %v1040 = vpop.permute.xlu0 %1039
    %1042 = vst.msk [vmem:[#allocation4] sm:$0x3] %vm116, %v1040
    %1043 = vst.msk [vmem:[%s9 + $0x4] sm:$0x3] %vm116, %v1035
    %v1044 = vld [vmem:[#allocation3] sm:$0x3]
    %v1045 = vld [vmem:[#allocation4] sm:$0x3]
    %v1046 = vld [vmem:[#allocation2 + $0x6] sm:$0x3]
    %v1048 = vsel %vm83, %v1044, 0
    %1050 = vmatpush.msra.mxu0 0.0
    %1051 = vmatpush.msra.mxu0 0.0
    %1052 = vmatpush.msra.mxu0 0.0
    %1053 = vmatpush.msra.mxu0 0.0
    %1054 = vmatpush.msra.mxu0 0.0
    %1055 = vmatpush.msra.mxu0 0.0
    %1056 = vmatpush.msra.mxu0 0.0
    %1057 = vmatpush.msra.mxu0 0.0
    %1058 = vmatpush.msra.mxu0 0.0
    %1059 = vmatpush.msra.mxu0 0.0
    %1060 = vmatpush.msra.mxu0 0.0
    %1061 = vmatpush.msra.mxu0 0.0
    %1062 = vmatpush.msra.mxu0 %v763
    %1063 = vmatpush.msra.mxu0 %v762
    %1064 = vmatpush.msra.mxu0 %v761
    %1065 = vmatpush.msra.mxu0 %v760
    %1066 = vmatmul.f32.gmra.mxu0 %v1048
    %v1067 = vpop.f32.mrf.mxu0
    %v1068 = vadd.f32 0.0, %v1067
    %1069 = vdwg.mxu0
    %v1070 = vadd.f32 %v1046, %v1068
    %v1071 = vxor.u32 %v1070, 2147483648
    %v1072 = vmul.f32 %v1071, 1.442695
    %v1073 = vpow.pop %v1072
    %v1074 = vadd.f32 %v1073, 1.0
    %v1075 = vrcp.pop %v1074
    %v1076 = vmul.f32 %v1074, %v1075
    %v1077 = vsub.f32 1.0, %v1076
    %v1078 = vmul.f32 %v1075, %v1077
    %v1079 = vadd.f32 %v1075, %v1078
    %vm1080 = vweird.f32 %v1074
    %vm1081 = vweird.f32 %v1075
    %vm1082 = vmor %vm1080, %vm1081
    %v1083 = vsel %vm1082, %v1075, %v1079
    %v1084 = vand.u32 2147483647, %v1074
    %vm1085 = vcmp.eq.f32.partialorder %v1084, 8.507059e+37
    %v1086 = vand.u32 %v1074, 2147483648
    %v1087 = vor.u32 1.1754944e-38, %v1086
    %v1088 = vsel %vm1085, %v1087, %v1083
    %v1089 = vmul.f32 1.0, %v1088
    %v1090 = vtanh.pop %v1070
    %1092 = vrot.lane.b32.xlu0 %v1045, 32
    %v1093 = vpop.permute.xlu0 %1092
    %v1095 = vmul.f32 %v1089, %v1093
    %1097 = vrot.lane.b32.xlu0 %v1090, 64
    %v1098 = vpop.permute.xlu0 %1097
    %v1100 = vmul.f32 %v1089, %v1098
    %1102 = vrot.lane.b32.xlu0 %v1100, 32
    %v1103 = vpop.permute.xlu0 %1102
    %v1105 = vadd.f32 %v1095, %v1103
    %v1106 = vtanh.pop %v1105
    %1108 = vrot.lane.b32.xlu0 %v1106, 64
    %v1109 = vpop.permute.xlu0 %1108
    %v1111 = vmul.f32 %v1089, %v1109
    %1113 = vrot.lane.b32.xlu0 %v1111, 32
    %v1114 = vpop.permute.xlu0 %1113
    %1116 = vst.msk [vmem:[#allocation3] sm:$0x3] %vm116, %v1114
    %1118 = vrot.lane.b32.xlu0 %v1105, 96
    %v1119 = vpop.permute.xlu0 %1118
    %1121 = vst.msk [vmem:[#allocation4] sm:$0x3] %vm116, %v1119
    %1122 = vst.msk [vmem:[%s9 + $0x6] sm:$0x3] %vm116, %v1114
    %v1123 = vld [vmem:[#allocation3] sm:$0x3]
    %v1124 = vld [vmem:[#allocation4] sm:$0x3]
    %v1125 = vld [vmem:[#allocation2 + $0x8] sm:$0x3]
    %v1127 = vsel %vm83, %v1123, 0
    %1129 = vmatpush.msra.mxu0 0.0
    %1130 = vmatpush.msra.mxu0 0.0
    %1131 = vmatpush.msra.mxu0 0.0
    %1132 = vmatpush.msra.mxu0 0.0
    %1133 = vmatpush.msra.mxu0 0.0
    %1134 = vmatpush.msra.mxu0 0.0
    %1135 = vmatpush.msra.mxu0 0.0
    %1136 = vmatpush.msra.mxu0 0.0
    %1137 = vmatpush.msra.mxu0 0.0
    %1138 = vmatpush.msra.mxu0 0.0
    %1139 = vmatpush.msra.mxu0 0.0
    %1140 = vmatpush.msra.mxu0 0.0
    %1141 = vmatpush.msra.mxu0 %v763
    %1142 = vmatpush.msra.mxu0 %v762
    %1143 = vmatpush.msra.mxu0 %v761
    %1144 = vmatpush.msra.mxu0 %v760
    %1145 = vmatmul.f32.gmra.mxu0 %v1127
    %v1146 = vpop.f32.mrf.mxu0
    %v1147 = vadd.f32 0.0, %v1146
    %1148 = vdwg.mxu0
    %v1149 = vadd.f32 %v1125, %v1147
    %v1150 = vxor.u32 %v1149, 2147483648
    %v1151 = vmul.f32 %v1150, 1.442695
    %v1152 = vpow.pop %v1151
    %v1153 = vadd.f32 %v1152, 1.0
    %v1154 = vrcp.pop %v1153
    %v1155 = vmul.f32 %v1153, %v1154
    %v1156 = vsub.f32 1.0, %v1155
    %v1157 = vmul.f32 %v1154, %v1156
    %v1158 = vadd.f32 %v1154, %v1157
    %vm1159 = vweird.f32 %v1153
    %vm1160 = vweird.f32 %v1154
    %vm1161 = vmor %vm1159, %vm1160
    %v1162 = vsel %vm1161, %v1154, %v1158
    %v1163 = vand.u32 2147483647, %v1153
    %vm1164 = vcmp.eq.f32.partialorder %v1163, 8.507059e+37
    %v1165 = vand.u32 %v1153, 2147483648
    %v1166 = vor.u32 1.1754944e-38, %v1165
    %v1167 = vsel %vm1164, %v1166, %v1162
    %v1168 = vmul.f32 1.0, %v1167
    %v1169 = vtanh.pop %v1149
    %1171 = vrot.lane.b32.xlu0 %v1124, 32
    %v1172 = vpop.permute.xlu0 %1171
    %v1174 = vmul.f32 %v1168, %v1172
    %1176 = vrot.lane.b32.xlu0 %v1169, 64
    %v1177 = vpop.permute.xlu0 %1176
    %v1179 = vmul.f32 %v1168, %v1177
    %1181 = vrot.lane.b32.xlu0 %v1179, 32
    %v1182 = vpop.permute.xlu0 %1181
    %v1184 = vadd.f32 %v1174, %v1182
    %v1185 = vtanh.pop %v1184
    %1187 = vrot.lane.b32.xlu0 %v1185, 64
    %v1188 = vpop.permute.xlu0 %1187
    %v1190 = vmul.f32 %v1168, %v1188
    %1192 = vrot.lane.b32.xlu0 %v1190, 32
    %v1193 = vpop.permute.xlu0 %1192
    %1195 = vst.msk [vmem:[#allocation3] sm:$0x3] %vm116, %v1193
    %1197 = vrot.lane.b32.xlu0 %v1184, 96
    %v1198 = vpop.permute.xlu0 %1197
    %1200 = vst.msk [vmem:[#allocation4] sm:$0x3] %vm116, %v1198
    %1201 = vst.msk [vmem:[%s9 + $0x8] sm:$0x3] %vm116, %v1193
    %v1202 = vld [vmem:[#allocation3] sm:$0x3]
    %v1203 = vld [vmem:[#allocation4] sm:$0x3]
    %v1204 = vld [vmem:[#allocation2 + $0xa] sm:$0x3]
    %v1206 = vsel %vm83, %v1202, 0
    %1208 = vmatpush.msra.mxu0 0.0
    %1209 = vmatpush.msra.mxu0 0.0
    %1210 = vmatpush.msra.mxu0 0.0
    %1211 = vmatpush.msra.mxu0 0.0
    %1212 = vmatpush.msra.mxu0 0.0
    %1213 = vmatpush.msra.mxu0 0.0
    %1214 = vmatpush.msra.mxu0 0.0
    %1215 = vmatpush.msra.mxu0 0.0
    %1216 = vmatpush.msra.mxu0 0.0
    %1217 = vmatpush.msra.mxu0 0.0
    %1218 = vmatpush.msra.mxu0 0.0
    %1219 = vmatpush.msra.mxu0 0.0
    %1220 = vmatpush.msra.mxu0 %v763
    %1221 = vmatpush.msra.mxu0 %v762
    %1222 = vmatpush.msra.mxu0 %v761
    %1223 = vmatpush.msra.mxu0 %v760
    %1224 = vmatmul.f32.gmra.mxu0 %v1206
    %v1225 = vpop.f32.mrf.mxu0
    %v1226 = vadd.f32 0.0, %v1225
    %1227 = vdwg.mxu0
    %v1228 = vadd.f32 %v1204, %v1226
    %v1229 = vxor.u32 %v1228, 2147483648
    %v1230 = vmul.f32 %v1229, 1.442695
    %v1231 = vpow.pop %v1230
    %v1232 = vadd.f32 %v1231, 1.0
    %v1233 = vrcp.pop %v1232
    %v1234 = vmul.f32 %v1232, %v1233
    %v1235 = vsub.f32 1.0, %v1234
    %v1236 = vmul.f32 %v1233, %v1235
    %v1237 = vadd.f32 %v1233, %v1236
    %vm1238 = vweird.f32 %v1232
    %vm1239 = vweird.f32 %v1233
    %vm1240 = vmor %vm1238, %vm1239
    %v1241 = vsel %vm1240, %v1233, %v1237
    %v1242 = vand.u32 2147483647, %v1232
    %vm1243 = vcmp.eq.f32.partialorder %v1242, 8.507059e+37
    %v1244 = vand.u32 %v1232, 2147483648
    %v1245 = vor.u32 1.1754944e-38, %v1244
    %v1246 = vsel %vm1243, %v1245, %v1241
    %v1247 = vmul.f32 1.0, %v1246
    %v1248 = vtanh.pop %v1228
    %1250 = vrot.lane.b32.xlu0 %v1203, 32
    %v1251 = vpop.permute.xlu0 %1250
    %v1253 = vmul.f32 %v1247, %v1251
    %1255 = vrot.lane.b32.xlu0 %v1248, 64
    %v1256 = vpop.permute.xlu0 %1255
    %v1258 = vmul.f32 %v1247, %v1256
    %1260 = vrot.lane.b32.xlu0 %v1258, 32
    %v1261 = vpop.permute.xlu0 %1260
    %v1263 = vadd.f32 %v1253, %v1261
    %v1264 = vtanh.pop %v1263
    %1266 = vrot.lane.b32.xlu0 %v1264, 64
    %v1267 = vpop.permute.xlu0 %1266
    %v1269 = vmul.f32 %v1247, %v1267
    %1271 = vrot.lane.b32.xlu0 %v1269, 32
    %v1272 = vpop.permute.xlu0 %1271
    %1274 = vst.msk [vmem:[#allocation3] sm:$0x3] %vm116, %v1272
    %1276 = vrot.lane.b32.xlu0 %v1263, 96
    %v1277 = vpop.permute.xlu0 %1276
    %1279 = vst.msk [vmem:[#allocation4] sm:$0x3] %vm116, %v1277
    %1280 = vst.msk [vmem:[%s9 + $0xa] sm:$0x3] %vm116, %v1272
    %v1281 = vld [vmem:[#allocation3] sm:$0x3]
    %v1282 = vld [vmem:[#allocation4] sm:$0x3]
    %v1283 = vld [vmem:[#allocation2 + $0xc] sm:$0x3]
    %v1285 = vsel %vm83, %v1281, 0
    %1287 = vmatpush.msra.mxu0 0.0
    %1288 = vmatpush.msra.mxu0 0.0
    %1289 = vmatpush.msra.mxu0 0.0
    %1290 = vmatpush.msra.mxu0 0.0
    %1291 = vmatpush.msra.mxu0 0.0
    %1292 = vmatpush.msra.mxu0 0.0
    %1293 = vmatpush.msra.mxu0 0.0
    %1294 = vmatpush.msra.mxu0 0.0
    %1295 = vmatpush.msra.mxu0 0.0
    %1296 = vmatpush.msra.mxu0 0.0
    %1297 = vmatpush.msra.mxu0 0.0
    %1298 = vmatpush.msra.mxu0 0.0
    %1299 = vmatpush.msra.mxu0 %v763
    %1300 = vmatpush.msra.mxu0 %v762
    %1301 = vmatpush.msra.mxu0 %v761
    %1302 = vmatpush.msra.mxu0 %v760
    %1303 = vmatmul.f32.gmra.mxu0 %v1285
    %v1304 = vpop.f32.mrf.mxu0
    %v1305 = vadd.f32 0.0, %v1304
    %1306 = vdwg.mxu0
    %v1307 = vadd.f32 %v1283, %v1305
    %v1308 = vxor.u32 %v1307, 2147483648
    %v1309 = vmul.f32 %v1308, 1.442695
    %v1310 = vpow.pop %v1309
    %v1311 = vadd.f32 %v1310, 1.0
    %v1312 = vrcp.pop %v1311
    %v1313 = vmul.f32 %v1311, %v1312
    %v1314 = vsub.f32 1.0, %v1313
    %v1315 = vmul.f32 %v1312, %v1314
    %v1316 = vadd.f32 %v1312, %v1315
    %vm1317 = vweird.f32 %v1311
    %vm1318 = vweird.f32 %v1312
    %vm1319 = vmor %vm1317, %vm1318
    %v1320 = vsel %vm1319, %v1312, %v1316
    %v1321 = vand.u32 2147483647, %v1311
    %vm1322 = vcmp.eq.f32.partialorder %v1321, 8.507059e+37
    %v1323 = vand.u32 %v1311, 2147483648
    %v1324 = vor.u32 1.1754944e-38, %v1323
    %v1325 = vsel %vm1322, %v1324, %v1320
    %v1326 = vmul.f32 1.0, %v1325
    %v1327 = vtanh.pop %v1307
    %1329 = vrot.lane.b32.xlu0 %v1282, 32
    %v1330 = vpop.permute.xlu0 %1329
    %v1332 = vmul.f32 %v1326, %v1330
    %1334 = vrot.lane.b32.xlu0 %v1327, 64
    %v1335 = vpop.permute.xlu0 %1334
    %v1337 = vmul.f32 %v1326, %v1335
    %1339 = vrot.lane.b32.xlu0 %v1337, 32
    %v1340 = vpop.permute.xlu0 %1339
    %v1342 = vadd.f32 %v1332, %v1340
    %v1343 = vtanh.pop %v1342
    %1345 = vrot.lane.b32.xlu0 %v1343, 64
    %v1346 = vpop.permute.xlu0 %1345
    %v1348 = vmul.f32 %v1326, %v1346
    %1350 = vrot.lane.b32.xlu0 %v1348, 32
    %v1351 = vpop.permute.xlu0 %1350
    %1353 = vst.msk [vmem:[#allocation3] sm:$0x3] %vm116, %v1351
    %1355 = vrot.lane.b32.xlu0 %v1342, 96
    %v1356 = vpop.permute.xlu0 %1355
    %1358 = vst.msk [vmem:[#allocation4] sm:$0x3] %vm116, %v1356
    %1359 = vst.msk [vmem:[%s9 + $0xc] sm:$0x3] %vm116, %v1351
    %v1360 = vld [vmem:[#allocation3] sm:$0x3]
    %v1361 = vld [vmem:[#allocation4] sm:$0x3]
    %v1362 = vld [vmem:[#allocation2 + $0xe] sm:$0x3]
    %v1364 = vsel %vm83, %v1360, 0
    %1366 = vmatpush.msra.mxu0 0.0
    %1367 = vmatpush.msra.mxu0 0.0
    %1368 = vmatpush.msra.mxu0 0.0
    %1369 = vmatpush.msra.mxu0 0.0
    %1370 = vmatpush.msra.mxu0 0.0
    %1371 = vmatpush.msra.mxu0 0.0
    %1372 = vmatpush.msra.mxu0 0.0
    %1373 = vmatpush.msra.mxu0 0.0
    %1374 = vmatpush.msra.mxu0 0.0
    %1375 = vmatpush.msra.mxu0 0.0
    %1376 = vmatpush.msra.mxu0 0.0
    %1377 = vmatpush.msra.mxu0 0.0
    %1378 = vmatpush.msra.mxu0 %v763
    %1379 = vmatpush.msra.mxu0 %v762
    %1380 = vmatpush.msra.mxu0 %v761
    %1381 = vmatpush.msra.mxu0 %v760
    %1382 = vmatmul.f32.gmra.mxu0 %v1364
    %v1383 = vpop.f32.mrf.mxu0
    %v1384 = vadd.f32 0.0, %v1383
    %1385 = vdwg.mxu0
    %v1386 = vadd.f32 %v1362, %v1384
    %v1387 = vxor.u32 %v1386, 2147483648
    %v1388 = vmul.f32 %v1387, 1.442695
    %v1389 = vpow.pop %v1388
    %v1390 = vadd.f32 %v1389, 1.0
    %v1391 = vrcp.pop %v1390
    %v1392 = vmul.f32 %v1390, %v1391
    %v1393 = vsub.f32 1.0, %v1392
    %v1394 = vmul.f32 %v1391, %v1393
    %v1395 = vadd.f32 %v1391, %v1394
    %vm1396 = vweird.f32 %v1390
    %vm1397 = vweird.f32 %v1391
    %vm1398 = vmor %vm1396, %vm1397
    %v1399 = vsel %vm1398, %v1391, %v1395
    %v1400 = vand.u32 2147483647, %v1390
    %vm1401 = vcmp.eq.f32.partialorder %v1400, 8.507059e+37
    %v1402 = vand.u32 %v1390, 2147483648
    %v1403 = vor.u32 1.1754944e-38, %v1402
    %v1404 = vsel %vm1401, %v1403, %v1399
    %v1405 = vmul.f32 1.0, %v1404
    %v1406 = vtanh.pop %v1386
    %1408 = vrot.lane.b32.xlu0 %v1361, 32
    %v1409 = vpop.permute.xlu0 %1408
    %v1411 = vmul.f32 %v1405, %v1409
    %1413 = vrot.lane.b32.xlu0 %v1406, 64
    %v1414 = vpop.permute.xlu0 %1413
    %v1416 = vmul.f32 %v1405, %v1414
    %1418 = vrot.lane.b32.xlu0 %v1416, 32
    %v1419 = vpop.permute.xlu0 %1418
    %v1421 = vadd.f32 %v1411, %v1419
    %v1422 = vtanh.pop %v1421
    %1424 = vrot.lane.b32.xlu0 %v1422, 64
    %v1425 = vpop.permute.xlu0 %1424
    %v1427 = vmul.f32 %v1405, %v1425
    %1429 = vrot.lane.b32.xlu0 %v1427, 32
    %v1430 = vpop.permute.xlu0 %1429
    %1432 = vst.msk [vmem:[#allocation3] sm:$0x3] %vm116, %v1430
    %1434 = vrot.lane.b32.xlu0 %v1421, 96
    %v1435 = vpop.permute.xlu0 %1434
    %1437 = vst.msk [vmem:[#allocation4] sm:$0x3] %vm116, %v1435
    %1438 = vst.msk [vmem:[%s9 + $0xe] sm:$0x3] %vm116, %v1430
    %v1439 = vld [vmem:[#allocation3] sm:$0x3]
    %s1440 = scalar_lea.vmem [#allocation10], 2
    %1441 = vst.msk [vmem:[%s1440] sm:$0x3] %vm116, %v1439
    %v1442 = vld [vmem:[#allocation4] sm:$0x3]
    %s1443 = scalar_lea.vmem [#allocation11], 2
    %1444 = vst.msk [vmem:[%s1443] sm:$0x3] %vm116, %v1442
    // Predicated region
    $region46: #{core_forward.1} parent=1 // pred_check
      _
    $region47: #{core_forward.1} parent=1 // pred_check_branch
      %1446 = sbr.rel (0) target = $region49
    $region48: #{core_forward.1} parent=1 // pred_region
      _
    $region49: #{core_forward.1} parent=1 // pred_fallthru
      _
    // Predicated region
    $region50: #{core_forward.1} parent=1 // pred_check
      _
    $region51: #{core_forward.1} parent=1 // pred_check_branch
      %1448 = sbr.rel (0) target = $region53
    $region52: #{core_forward.1} parent=1 // pred_region
      %1450 = vsyncadd [#allocation7], 0
      %s1451 = sshll.u32 [#allocation10], 4
      %s1452 = int_to_ptr.vmem [resolvable:$true] %s1451
      %s1453 = sshll.u32 %s10, 4
      %s1454 = int_to_ptr.hbm [resolvable:$true] %s1453
      %1459 = dma.vmem_to_hbm [thread:$0]  %s1452, 64, %s1454, [#allocation7], 32, 32, 2
    $region53: #{core_forward.1} parent=1 // pred_fallthru
      _
    // Predicated region
    $region54: #{core_forward.1} parent=1 // pred_check
      _
    $region55: #{core_forward.1} parent=1 // pred_check_branch
      %1461 = sbr.rel (0) target = $region57
    $region56: #{core_forward.1} parent=1 // pred_region
      %1463 = vsyncadd [#allocation12], 0
      %s1464 = sshll.u32 [#allocation11], 4
      %s1465 = int_to_ptr.vmem [resolvable:$true] %s1464
      %s1466 = sshll.u32 %s11, 4
      %s1467 = int_to_ptr.hbm [resolvable:$true] %s1466
      %1472 = dma.vmem_to_hbm [thread:$0]  %s1465, 64, %s1467, [#allocation12], 32, 32, 2
    $region57: #{core_forward.1} parent=1 // pred_fallthru
      _
    // Predicated region
    $region58: #{core_forward.1} parent=1 // pred_check
      _
    $region59: #{core_forward.1} parent=1 // pred_check_branch
      %1474 = sbr.rel (0) target = $region61
    $region60: #{core_forward.1} parent=1 // pred_region
      _
    $region61: #{core_forward.1} parent=1 // pred_fallthru
      _
    // Predicated region
    $region62: #{core_forward.1} parent=1 // pred_check
      _
    $region63: #{core_forward.1} parent=1 // pred_check_branch
      %1476 = sbr.rel (0) target = $region65
    $region64: #{core_forward.1} parent=1 // pred_region
      %1478 = dma.done [#allocation7], 64
    $region65: #{core_forward.1} parent=1 // pred_fallthru
      _
    // Predicated region
    $region66: #{core_forward.1} parent=1 // pred_check
      _
    $region67: #{core_forward.1} parent=1 // pred_check_branch
      %1480 = sbr.rel (0) target = $region69
    $region68: #{core_forward.1} parent=1 // pred_region
      %1482 = dma.done [#allocation12], 64
    $region69: #{core_forward.1} parent=1 // pred_fallthru
      _
    %1483 = vsyncpa [#allocation6], 1
    %1484 = vsyncpa [#allocation9], 1
    %1485 = vsyncpa [#allocation7], 1
    %1486 = vsyncpa [#allocation12], 1

</llo_original>
